<compile_context>
chip_gen: v7x
topology: tpu7x:2x2x1
jax: 0.10.0
libtpu: 0.0.40
codegen_flags: <defaults>
</compile_context>

<pallas_src>
import math
from functools import partial

import jax
import jax.numpy as jnp
from jax.experimental import pallas as pl
from jax.experimental.pallas import tpu as pltpu

LN_EPS = 1e-6  # LayerNorm2d eps (ViT-style)


# ----------------------------------------------------------------------------- fused kernel
def _gelu_erf(x):
    """erf-based GELU. erf via Abramowitz & Stegun 7.1.26 (exp + EUP reciprocal only)."""
    z = x * 0.7071067811865476
    s = jnp.where(z >= 0.0, 1.0, -1.0)
    az = jnp.abs(z)
    t = pl.reciprocal(1.0 + 0.3275911 * az, approx=True)   # EUP vrcp, frees the VALU slot
    poly = ((((1.061405429 * t - 1.453152027) * t + 1.421413741) * t - 0.284496736) * t
            + 0.254829592) * t
    erf = s * (1.0 - poly * jnp.exp(-az * az))
    return 0.5 * x * (1.0 + erf)


def _gemm_ln_act_kernel(x_ref, w_ref, b_ref, g_ref, bb_ref, o_ref, *, eps, c_real, apply_gelu):
    """One M-tile of: (patches @ W) + bias -> LayerNorm over channels -> optional GELU.

    x_ref : (bm, Kp)  bf16 im2col patches (zero-padded rows/cols are exact zeros)
    w_ref : (Kp, Cp)  bf16 reshaped conv weight, Cout zero-padded to Cp (multiple of 128)
    b_ref / g_ref / bb_ref : (1, Cp) f32 conv bias / LN gamma / LN beta (zero-padded)
    o_ref : (bm, Cp)  bf16 or f32
    """
    acc = jnp.dot(x_ref[...], w_ref[...], preferred_element_type=jnp.float32)  # MXU, f32 acc
    y = acc + b_ref[...]                                   # padded cols stay exactly 0

    # LayerNorm2d == LayerNorm over the channel dim per spatial position (rows here).
    # Stats use the TRUE channel count; padded lanes are masked out of the variance.
    inv_c = 1.0 / c_real
    lane = jax.lax.broadcasted_iota(jnp.int32, y.shape, 1)
    real = lane < c_real
    mean = jnp.sum(y, axis=-1, keepdims=True) * inv_c      # padded cols contribute 0 to the sum
    diff = jnp.where(real, y - mean, 0.0)
    var = jnp.sum(diff * diff, axis=-1, keepdims=True) * inv_c
    y = diff * jax.lax.rsqrt(var + eps) * g_ref[...] + bb_ref[...]
    if apply_gelu:
        y = _gelu_erf(y)
    o_ref[...] = y.astype(o_ref.dtype)


# ----------------------------------------------------------------------------- glue
def _im2col(x_nhwc, K, stride, pad):
    """Strided 3x3 patch extraction in JAX glue -> (B*OH*OW, K*K*Cin) (dtype of x)."""
    B, H, W, Cin = x_nhwc.shape
    xp = jnp.pad(x_nhwc, ((0, 0), (pad, pad), (pad, pad), (0, 0)))
    OH = (H + 2 * pad - K) // stride + 1
    OW = (W + 2 * pad - K) // stride + 1
    cols = []
    for ky in range(K):
        for kx in range(K):
            cols.append(xp[:, ky:ky + stride * (OH - 1) + 1:stride,
                           kx:kx + stride * (OW - 1) + 1:stride, :])
    patches = jnp.stack(cols, axis=3)                   # (B, OH, OW, K*K, Cin)
    return patches.reshape(B * OH * OW, K * K * Cin), (B, OH, OW)


def conv_ln_act_pallas(x_nhwc, w, b, ln_g, ln_b, *, stride, pad, apply_gelu,
                       out_dtype=jnp.float32, eps=LN_EPS):
    """Fused Conv2d(k=K,s=stride,p=pad,bias) + LayerNorm2d + optional GELU.

    x_nhwc: (B, H, W, Cin)   w: (K, K, Cin, Cout)   b/ln_g/ln_b: (Cout,)
    Returns (B, OH, OW, Cout) in out_dtype.
    """
    K, _, Cin, Cout = w.shape
    patches, (B, OH, OW) = _im2col(x_nhwc.astype(jnp.bfloat16), K, stride, pad)
    M, Kdim = patches.shape

    # Contraction dim -> multiple of 32 (bf16 sublane packing).  Deliberately NOT 128.
    Kp = ((Kdim + 31) // 32) * 32
    # Output channel dim -> multiple of 128: lane-dense stores + full MXU N width.
    Cp = ((Cout + 127) // 128) * 128

    wm = w.reshape(K * K * Cin, Cout).astype(jnp.bfloat16)
    wm = jnp.pad(wm, ((0, Kp - Kdim), (0, Cp - Cout)))
    if Kp != Kdim:
        patches = jnp.pad(patches, ((0, 0), (0, Kp - Kdim)))

    def pad_c(v):
        return jnp.pad(v.astype(jnp.float32), (0, Cp - Cout)).reshape(1, Cp)

    # M tiling: fat tiles to amortize per-grid-step overhead, but keep >=2 blocks when M allows
    # so both v7x TensorCores get work on the "parallel" axis.
    BM_MAX = 512
    if M <= 128:
        bm = 128
    elif M <= 2 * BM_MAX:
        bm = min(BM_MAX, (((M + 1) // 2 + 127) // 128) * 128)
    else:
        bm = BM_MAX
    n_blk = pl.cdiv(M, bm)
    Mp = n_blk * bm
    if Mp != M:
        patches = jnp.pad(patches, ((0, Mp - M), (0, 0)))

    y = pl.pallas_call(
        partial(_gemm_ln_act_kernel, eps=eps, c_real=Cout, apply_gelu=apply_gelu),
        out_shape=jax.ShapeDtypeStruct((Mp, Cp), out_dtype),
        grid=(n_blk,),
        in_specs=[
            pl.BlockSpec((bm, Kp), lambda i: (i, 0)),
            pl.BlockSpec((Kp, Cp), lambda i: (0, 0)),
            pl.BlockSpec((1, Cp), lambda i: (0, 0)),
            pl.BlockSpec((1, Cp), lambda i: (0, 0)),
            pl.BlockSpec((1, Cp), lambda i: (0, 0)),
        ],
        out_specs=pl.BlockSpec((bm, Cp), lambda i: (i, 0)),
        compiler_params=pltpu.CompilerParams(
            dimension_semantics=("parallel",),
            vmem_limit_bytes=32 * 1024 * 1024,   # explicit: v5e default scoped VMEM is 16 MiB
        ),
    )(
        patches,                                  # bf16 MXU operand
        wm,                                       # bf16 MXU operand
        pad_c(b), pad_c(ln_g), pad_c(ln_b),       # f32 epilogue params
    )
    return y[:M, :Cout].reshape(B, OH, OW, Cout)


# ----------------------------------------------------------------------------- module forward
def downsample_v2_forward(params, x_nchw, patch_size=4):
    """DownsampleV2.forward: conv1(ConvModule conv->LN2d->GELU) then conv2(conv->LN2d)."""
    assert patch_size in (2, 4)
    # Inter-stage / patch tensors live in bf16 (module is HBM-bound); kernel math is f32.
    x = jnp.transpose(x_nchw.astype(jnp.bfloat16), (0, 2, 3, 1))          # NCHW -> NHWC
    if patch_size == 4:
        p1 = params["conv1"]
        x = conv_ln_act_pallas(x, p1["w"], p1["b"], p1["ln_g"], p1["ln_b"],
                               stride=2, pad=1, apply_gelu=True,
                               out_dtype=jnp.bfloat16)
    # patch_size == 2: conv1 is nn.Identity()
    p2 = params["conv2"]
    x = conv_ln_act_pallas(x, p2["w"], p2["b"], p2["ln_g"], p2["ln_b"],
                           stride=2, pad=1, apply_gelu=False,
                           out_dtype=jnp.float32)
    return jnp.transpose(x, (0, 3, 1, 2))                                 # back to NCHW
    # TODO(synk): BlurPoolConv2d / apply_blurpool not implemented (with_blurpool=False default).


# ----------------------------------------------------------------------------- deterministic params
def init_params(key, in_chs=3, out_chs=64, kernel_size=3, ratio=0.5):
    mid_chs = int(out_chs * ratio)

    def conv_stage(k, cin, cout, ks):
        fan_out = ks * ks * cout
        w = jax.random.normal(k, (ks, ks, cin, cout), jnp.float32) * math.sqrt(2.0 / fan_out)
        return {
            "w": w,
            "b": jnp.zeros((cout,), jnp.float32),
            "ln_g": jnp.ones((cout,), jnp.float32),
            "ln_b": jnp.zeros((cout,), jnp.float32),
        }

    k1, k2 = jax.random.split(key)
    return {
        "conv1": conv_stage(k1, in_chs, mid_chs, kernel_size),
        "conv2": conv_stage(k2, mid_chs, out_chs, kernel_size),
    }


# ----------------------------------------------------------------------------- main
if __name__ == "__main__":
    IN_CHS, OUT_CHS, IMG, BATCH = 3, 64, 32, 2
    root = jax.random.PRNGKey(0)
    params = init_params(jax.random.fold_in(root, 1), in_chs=IN_CHS, out_chs=OUT_CHS)
    x = jax.random.normal(jax.random.fold_in(root, 2), (BATCH, IN_CHS, IMG, IMG), jnp.float32)

    fwd = jax.jit(partial(downsample_v2_forward, patch_size=4))
    out = fwd(params, x)
    jax.block_until_ready(out)

    assert out.shape == (BATCH, OUT_CHS, IMG // 4, IMG // 4), out.shape
    assert bool(jnp.all(jnp.isfinite(out))), "non-finite output"
    print("KERNEL_OK")
</pallas_src>

<mosaic_0001>
module attributes {stable_mosaic.version = 11 : i64} {
  func.func @_gemm_ln_act_kernel(%arg0: i32, %arg1: memref<256x32xbf16, #tpu.memory_space<vmem>>, %arg2: memref<32x128xbf16, #tpu.memory_space<vmem>>, %arg3: memref<1x128xf32, #tpu.memory_space<vmem>>, %arg4: memref<1x128xf32, #tpu.memory_space<vmem>>, %arg5: memref<1x128xf32, #tpu.memory_space<vmem>>, %arg6: memref<256x128xbf16, #tpu.memory_space<vmem>>) attributes {dimension_semantics = [#tpu.dimension_semantics<parallel>], iteration_bounds = array<i64: 2>, scalar_prefetch = 0 : i64, scratch_operands = 0 : i64, tpu.core_type = #tpu.core_type<tc>, window_params = [{transform_indices = @transform_0, window_bounds = array<i64: 256, 32>}, {pipeline_mode = #tpu.pipeline_mode<synchronous>, transform_indices = @transform_1, window_bounds = array<i64: 32, 128>}, {pipeline_mode = #tpu.pipeline_mode<synchronous>, transform_indices = @transform_2, window_bounds = array<i64: 1, 128>}, {pipeline_mode = #tpu.pipeline_mode<synchronous>, transform_indices = @transform_3, window_bounds = array<i64: 1, 128>}, {pipeline_mode = #tpu.pipeline_mode<synchronous>, transform_indices = @transform_4, window_bounds = array<i64: 1, 128>}, {transform_indices = @transform_5, window_bounds = array<i64: 256, 128>}]} {
    %c0 = arith.constant 0 : index
    %c0_0 = arith.constant 0 : index
    %0 = vector.load %arg1[%c0, %c0_0] : memref<256x32xbf16, #tpu.memory_space<vmem>>, vector<256x32xbf16>
    %c0_1 = arith.constant 0 : index
    %c0_2 = arith.constant 0 : index
    %1 = vector.load %arg2[%c0_1, %c0_2] : memref<32x128xbf16, #tpu.memory_space<vmem>>, vector<32x128xbf16>
    %cst = arith.constant dense<0.000000e+00> : vector<256x128xf32>
    %2 = tpu.matmul %0, %1, %cst {dimension_numbers = #tpu.dot_dimension_numbers<[1], [0], [0], [1], [0, 0, 1, 1], [], []>} : vector<256x32xbf16>, vector<32x128xbf16>, vector<256x128xf32> -> vector<256x128xf32>
    %c0_3 = arith.constant 0 : index
    %c0_4 = arith.constant 0 : index
    %3 = vector.load %arg3[%c0_3, %c0_4] : memref<1x128xf32, #tpu.memory_space<vmem>>, vector<1x128xf32>
    %4 = vector.broadcast %3 : vector<1x128xf32> to vector<256x128xf32>
    %5 = arith.addf %2, %4 : vector<256x128xf32>
    %6 = tpu.iota {dimensions = array<i32: 1>} : vector<256x128xi32>
    %c32_i32 = arith.constant 32 : i32
    %7 = vector.broadcast %c32_i32 : i32 to vector<256x128xi32>
    %8 = arith.cmpi slt, %6, %7 : vector<256x128xi32>
    %cst_5 = arith.constant dense<0.000000e+00> : vector<256xf32>
    %9 = vector.multi_reduction <add>, %5, %cst_5 [1] : vector<256x128xf32> to vector<256xf32>
    %10 = vector.shape_cast %9 : vector<256xf32> to vector<256x1xf32>
    %cst_6 = arith.constant 3.125000e-02 : f32
    %11 = vector.broadcast %cst_6 : f32 to vector<256x1xf32>
    %12 = arith.mulf %10, %11 : vector<256x1xf32>
    %13 = vector.broadcast %12 : vector<256x1xf32> to vector<256x128xf32>
    %14 = arith.subf %5, %13 : vector<256x128xf32>
    %cst_7 = arith.constant 0.000000e+00 : f32
    %15 = vector.broadcast %cst_7 : f32 to vector<256x128xf32>
    %16 = arith.select %8, %14, %15 : vector<256x128xi1>, vector<256x128xf32>
    %17 = arith.mulf %16, %16 : vector<256x128xf32>
    %cst_8 = arith.constant dense<0.000000e+00> : vector<256xf32>
    %18 = vector.multi_reduction <add>, %17, %cst_8 [1] : vector<256x128xf32> to vector<256xf32>
    %19 = vector.shape_cast %18 : vector<256xf32> to vector<256x1xf32>
    %cst_9 = arith.constant 3.125000e-02 : f32
    %20 = vector.broadcast %cst_9 : f32 to vector<256x1xf32>
    %21 = arith.mulf %19, %20 : vector<256x1xf32>
    %cst_10 = arith.constant 9.99999997E-7 : f32
    %22 = vector.broadcast %cst_10 : f32 to vector<256x1xf32>
    %23 = arith.addf %21, %22 : vector<256x1xf32>
    %24 = math.rsqrt %23 : vector<256x1xf32>
    %25 = vector.broadcast %24 : vector<256x1xf32> to vector<256x128xf32>
    %26 = arith.mulf %16, %25 : vector<256x128xf32>
    %c0_11 = arith.constant 0 : index
    %c0_12 = arith.constant 0 : index
    %27 = vector.load %arg4[%c0_11, %c0_12] : memref<1x128xf32, #tpu.memory_space<vmem>>, vector<1x128xf32>
    %28 = vector.broadcast %27 : vector<1x128xf32> to vector<256x128xf32>
    %29 = arith.mulf %26, %28 : vector<256x128xf32>
    %c0_13 = arith.constant 0 : index
    %c0_14 = arith.constant 0 : index
    %30 = vector.load %arg5[%c0_13, %c0_14] : memref<1x128xf32, #tpu.memory_space<vmem>>, vector<1x128xf32>
    %31 = vector.broadcast %30 : vector<1x128xf32> to vector<256x128xf32>
    %32 = arith.addf %29, %31 : vector<256x128xf32>
    %cst_15 = arith.constant 0.707106769 : f32
    %33 = vector.broadcast %cst_15 : f32 to vector<256x128xf32>
    %34 = arith.mulf %32, %33 : vector<256x128xf32>
    %cst_16 = arith.constant 0.000000e+00 : f32
    %35 = vector.broadcast %cst_16 : f32 to vector<256x128xf32>
    %36 = arith.cmpf oge, %34, %35 : vector<256x128xf32>
    %cst_17 = arith.constant 1.000000e+00 : f32
    %cst_18 = arith.constant -1.000000e+00 : f32
    %37 = vector.broadcast %cst_17 : f32 to vector<256x128xf32>
    %38 = vector.broadcast %cst_18 : f32 to vector<256x128xf32>
    %39 = arith.select %36, %37, %38 : vector<256x128xi1>, vector<256x128xf32>
    %40 = math.absf %34 : vector<256x128xf32>
    %cst_19 = arith.constant 0.327591091 : f32
    %41 = vector.broadcast %cst_19 : f32 to vector<256x128xf32>
    %42 = arith.mulf %41, %40 : vector<256x128xf32>
    %cst_20 = arith.constant 1.000000e+00 : f32
    %43 = vector.broadcast %cst_20 : f32 to vector<256x128xf32>
    %44 = arith.addf %43, %42 : vector<256x128xf32>
    %45 = tpu.reciprocal %44 {approx = true} : vector<256x128xf32> -> vector<256x128xf32>
    %cst_21 = arith.constant 1.06140542 : f32
    %46 = vector.broadcast %cst_21 : f32 to vector<256x128xf32>
    %47 = arith.mulf %46, %45 : vector<256x128xf32>
    %cst_22 = arith.constant 1.45315206 : f32
    %48 = vector.broadcast %cst_22 : f32 to vector<256x128xf32>
    %49 = arith.subf %47, %48 : vector<256x128xf32>
    %50 = arith.mulf %49, %45 : vector<256x128xf32>
    %cst_23 = arith.constant 1.42141378 : f32
    %51 = vector.broadcast %cst_23 : f32 to vector<256x128xf32>
    %52 = arith.addf %50, %51 : vector<256x128xf32>
    %53 = arith.mulf %52, %45 : vector<256x128xf32>
    %cst_24 = arith.constant 0.284496725 : f32
    %54 = vector.broadcast %cst_24 : f32 to vector<256x128xf32>
    %55 = arith.subf %53, %54 : vector<256x128xf32>
    %56 = arith.mulf %55, %45 : vector<256x128xf32>
    %cst_25 = arith.constant 0.254829586 : f32
    %57 = vector.broadcast %cst_25 : f32 to vector<256x128xf32>
    %58 = arith.addf %56, %57 : vector<256x128xf32>
    %59 = arith.mulf %58, %45 : vector<256x128xf32>
    %cst_26 = arith.constant 0.000000e+00 : f32
    %60 = vector.broadcast %cst_26 : f32 to vector<256x128xf32>
    %61 = arith.subf %60, %40 : vector<256x128xf32>
    %62 = arith.mulf %61, %40 : vector<256x128xf32>
    %63 = math.exp %62 : vector<256x128xf32>
    %64 = arith.mulf %59, %63 : vector<256x128xf32>
    %cst_27 = arith.constant 1.000000e+00 : f32
    %65 = vector.broadcast %cst_27 : f32 to vector<256x128xf32>
    %66 = arith.subf %65, %64 : vector<256x128xf32>
    %67 = arith.mulf %39, %66 : vector<256x128xf32>
    %cst_28 = arith.constant 5.000000e-01 : f32
    %68 = vector.broadcast %cst_28 : f32 to vector<256x128xf32>
    %69 = arith.mulf %68, %32 : vector<256x128xf32>
    %cst_29 = arith.constant 1.000000e+00 : f32
    %70 = vector.broadcast %cst_29 : f32 to vector<256x128xf32>
    %71 = arith.addf %70, %67 : vector<256x128xf32>
    %72 = arith.mulf %69, %71 : vector<256x128xf32>
    %73 = arith.truncf %72 : vector<256x128xf32> to vector<256x128xbf16>
    %c0_30 = arith.constant 0 : index
    %c0_31 = arith.constant 0 : index
    %74 = vector.load %arg6[%c0_30, %c0_31] : memref<256x128xbf16, #tpu.memory_space<vmem>>, vector<256x128xbf16>
    tpu.vector_store %arg6[%c0_30, %c0_31], %73 {strides = array<i32>} : memref<256x128xbf16, #tpu.memory_space<vmem>>, vector<256x128xbf16>,
    return
  }
  func.func @transform_0(%arg0: i32) -> (i32, i32) {
    %c0_i32 = arith.constant 0 : i32
    %c0_i32_0 = arith.constant 0 : i32
    return %arg0, %c0_i32 : i32, i32
  }
  func.func @transform_1(%arg0: i32) -> (i32, i32) {
    %c0_i32 = arith.constant 0 : i32
    %c0_i32_0 = arith.constant 0 : i32
    %c0_i32_1 = arith.constant 0 : i32
    return %c0_i32, %c0_i32_0 : i32, i32
  }
  func.func @transform_2(%arg0: i32) -> (i32, i32) {
    %c0_i32 = arith.constant 0 : i32
    %c0_i32_0 = arith.constant 0 : i32
    %c0_i32_1 = arith.constant 0 : i32
    return %c0_i32, %c0_i32_0 : i32, i32
  }
  func.func @transform_3(%arg0: i32) -> (i32, i32) {
    %c0_i32 = arith.constant 0 : i32
    %c0_i32_0 = arith.constant 0 : i32
    %c0_i32_1 = arith.constant 0 : i32
    return %c0_i32, %c0_i32_0 : i32, i32
  }
  func.func @transform_4(%arg0: i32) -> (i32, i32) {
    %c0_i32 = arith.constant 0 : i32
    %c0_i32_0 = arith.constant 0 : i32
    %c0_i32_1 = arith.constant 0 : i32
    return %c0_i32, %c0_i32_0 : i32, i32
  }
  func.func @transform_5(%arg0: i32) -> (i32, i32) {
    %c0_i32 = arith.constant 0 : i32
    %c0_i32_0 = arith.constant 0 : i32
    return %arg0, %c0_i32 : i32, i32
  }
}

module attributes {stable_mosaic.version = 11 : i64} {
  func.func @_gemm_ln_act_kernel(%arg0: i32, %arg1: memref<128x288xbf16, #tpu.memory_space<vmem>>, %arg2: memref<288x128xbf16, #tpu.memory_space<vmem>>, %arg3: memref<1x128xf32, #tpu.memory_space<vmem>>, %arg4: memref<1x128xf32, #tpu.memory_space<vmem>>, %arg5: memref<1x128xf32, #tpu.memory_space<vmem>>, %arg6: memref<128x128xf32, #tpu.memory_space<vmem>>) attributes {dimension_semantics = [#tpu.dimension_semantics<parallel>], iteration_bounds = array<i64: 1>, scalar_prefetch = 0 : i64, scratch_operands = 0 : i64, tpu.core_type = #tpu.core_type<tc>, window_params = [{transform_indices = @transform_0, window_bounds = array<i64: 128, 288>}, {pipeline_mode = #tpu.pipeline_mode<synchronous>, transform_indices = @transform_1, window_bounds = array<i64: 288, 128>}, {pipeline_mode = #tpu.pipeline_mode<synchronous>, transform_indices = @transform_2, window_bounds = array<i64: 1, 128>}, {pipeline_mode = #tpu.pipeline_mode<synchronous>, transform_indices = @transform_3, window_bounds = array<i64: 1, 128>}, {pipeline_mode = #tpu.pipeline_mode<synchronous>, transform_indices = @transform_4, window_bounds = array<i64: 1, 128>}, {transform_indices = @transform_5, window_bounds = array<i64: 128, 128>}]} {
    %c0 = arith.constant 0 : index
    %c0_0 = arith.constant 0 : index
    %0 = vector.load %arg1[%c0, %c0_0] : memref<128x288xbf16, #tpu.memory_space<vmem>>, vector<128x288xbf16>
    %c0_1 = arith.constant 0 : index
    %c0_2 = arith.constant 0 : index
    %1 = vector.load %arg2[%c0_1, %c0_2] : memref<288x128xbf16, #tpu.memory_space<vmem>>, vector<288x128xbf16>
    %cst = arith.constant dense<0.000000e+00> : vector<128x128xf32>
    %2 = tpu.matmul %0, %1, %cst {dimension_numbers = #tpu.dot_dimension_numbers<[1], [0], [0], [1], [0, 0, 1, 1], [], []>} : vector<128x288xbf16>, vector<288x128xbf16>, vector<128x128xf32> -> vector<128x128xf32>
    %c0_3 = arith.constant 0 : index
    %c0_4 = arith.constant 0 : index
    %3 = vector.load %arg3[%c0_3, %c0_4] : memref<1x128xf32, #tpu.memory_space<vmem>>, vector<1x128xf32>
    %4 = vector.broadcast %3 : vector<1x128xf32> to vector<128x128xf32>
    %5 = arith.addf %2, %4 : vector<128x128xf32>
    %6 = tpu.iota {dimensions = array<i32: 1>} : vector<128x128xi32>
    %c64_i32 = arith.constant 64 : i32
    %7 = vector.broadcast %c64_i32 : i32 to vector<128x128xi32>
    %8 = arith.cmpi slt, %6, %7 : vector<128x128xi32>
    %cst_5 = arith.constant dense<0.000000e+00> : vector<128xf32>
    %9 = vector.multi_reduction <add>, %5, %cst_5 [1] : vector<128x128xf32> to vector<128xf32>
    %10 = vector.shape_cast %9 : vector<128xf32> to vector<128x1xf32>
    %cst_6 = arith.constant 1.562500e-02 : f32
    %11 = vector.broadcast %cst_6 : f32 to vector<128x1xf32>
    %12 = arith.mulf %10, %11 : vector<128x1xf32>
    %13 = vector.broadcast %12 : vector<128x1xf32> to vector<128x128xf32>
    %14 = arith.subf %5, %13 : vector<128x128xf32>
    %cst_7 = arith.constant 0.000000e+00 : f32
    %15 = vector.broadcast %cst_7 : f32 to vector<128x128xf32>
    %16 = arith.select %8, %14, %15 : vector<128x128xi1>, vector<128x128xf32>
    %17 = arith.mulf %16, %16 : vector<128x128xf32>
    %cst_8 = arith.constant dense<0.000000e+00> : vector<128xf32>
    %18 = vector.multi_reduction <add>, %17, %cst_8 [1] : vector<128x128xf32> to vector<128xf32>
    %19 = vector.shape_cast %18 : vector<128xf32> to vector<128x1xf32>
    %cst_9 = arith.constant 1.562500e-02 : f32
    %20 = vector.broadcast %cst_9 : f32 to vector<128x1xf32>
    %21 = arith.mulf %19, %20 : vector<128x1xf32>
    %cst_10 = arith.constant 9.99999997E-7 : f32
    %22 = vector.broadcast %cst_10 : f32 to vector<128x1xf32>
    %23 = arith.addf %21, %22 : vector<128x1xf32>
    %24 = math.rsqrt %23 : vector<128x1xf32>
    %25 = vector.broadcast %24 : vector<128x1xf32> to vector<128x128xf32>
    %26 = arith.mulf %16, %25 : vector<128x128xf32>
    %c0_11 = arith.constant 0 : index
    %c0_12 = arith.constant 0 : index
    %27 = vector.load %arg4[%c0_11, %c0_12] : memref<1x128xf32, #tpu.memory_space<vmem>>, vector<1x128xf32>
    %28 = vector.broadcast %27 : vector<1x128xf32> to vector<128x128xf32>
    %29 = arith.mulf %26, %28 : vector<128x128xf32>
    %c0_13 = arith.constant 0 : index
    %c0_14 = arith.constant 0 : index
    %30 = vector.load %arg5[%c0_13, %c0_14] : memref<1x128xf32, #tpu.memory_space<vmem>>, vector<1x128xf32>
    %31 = vector.broadcast %30 : vector<1x128xf32> to vector<128x128xf32>
    %32 = arith.addf %29, %31 : vector<128x128xf32>
    %c0_15 = arith.constant 0 : index
    %c0_16 = arith.constant 0 : index
    %33 = vector.load %arg6[%c0_15, %c0_16] : memref<128x128xf32, #tpu.memory_space<vmem>>, vector<128x128xf32>
    tpu.vector_store %arg6[%c0_15, %c0_16], %32 {strides = array<i32>} : memref<128x128xf32, #tpu.memory_space<vmem>>, vector<128x128xf32>,
    return
  }
  func.func @transform_0(%arg0: i32) -> (i32, i32) {
    %c0_i32 = arith.constant 0 : i32
    %c0_i32_0 = arith.constant 0 : i32
    return %arg0, %c0_i32 : i32, i32
  }
  func.func @transform_1(%arg0: i32) -> (i32, i32) {
    %c0_i32 = arith.constant 0 : i32
    %c0_i32_0 = arith.constant 0 : i32
    %c0_i32_1 = arith.constant 0 : i32
    return %c0_i32, %c0_i32_0 : i32, i32
  }
  func.func @transform_2(%arg0: i32) -> (i32, i32) {
    %c0_i32 = arith.constant 0 : i32
    %c0_i32_0 = arith.constant 0 : i32
    %c0_i32_1 = arith.constant 0 : i32
    return %c0_i32, %c0_i32_0 : i32, i32
  }
  func.func @transform_3(%arg0: i32) -> (i32, i32) {
    %c0_i32 = arith.constant 0 : i32
    %c0_i32_0 = arith.constant 0 : i32
    %c0_i32_1 = arith.constant 0 : i32
    return %c0_i32, %c0_i32_0 : i32, i32
  }
  func.func @transform_4(%arg0: i32) -> (i32, i32) {
    %c0_i32 = arith.constant 0 : i32
    %c0_i32_0 = arith.constant 0 : i32
    %c0_i32_1 = arith.constant 0 : i32
    return %c0_i32, %c0_i32_0 : i32, i32
  }
  func.func @transform_5(%arg0: i32) -> (i32, i32) {
    %c0_i32 = arith.constant 0 : i32
    %c0_i32_0 = arith.constant 0 : i32
    return %arg0, %c0_i32 : i32, i32
  }
}

</mosaic_0001>

<llo_original>
// kernel: downsample_v2_forward.2
$region0: #{downsample_v2_forward.2}
  #allocation0 [shape = 'u32[]', space=smem, size = 0x4, offset = 0x4, fixed_abs, tag = 'smem constant byte address 0x4 - core index']
  #allocation1 [shape = 'u32[144,128]{1,0:T(1,128)}', space=vmem, size = 0x12000, scoped, tag = 'internal scratch']
  %s0 = inlined_call_operand.vmem [shape: bf16[512,32], index: 0, kind: input, shape index: {}]
  %s1 = inlined_call_operand.vmem [shape: bf16[32,128], index: 1, kind: input, shape index: {}]
  %s2 = inlined_call_operand.vmem [shape: f32[1,128], index: 2, kind: input, shape index: {}]
  %s3 = inlined_call_operand.vmem [shape: f32[1,128], index: 3, kind: input, shape index: {}]
  %s4 = inlined_call_operand.vmem [shape: f32[1,128], index: 4, kind: input, shape index: {}]
  %s5 = inlined_call_operand.vmem [shape: bf16[512,128], index: 5, kind: output, shape index: {}]
  %s6 = sld [smem:[#allocation0]]
  $region53: #{downsample_v2_forward.2} parent=0
    _
  %s8 = ssub.s32 1, %s6
  %s9 = scalar_select 0, %s8, %s6
  loop: start=0, step=1, limit=4
  $region2: #{downsample_v2_forward.2} parent=0 // loop_pre_header
    _
  $region3: #{downsample_v2_forward.2} parent=0 // loop_header
    %s11 = sphi 0, %s15
    %p12 = scmp.ge.s32.totalorder %s11, 4
    %s21 = sphi 0, %s23
    %s24 = sphi 0, %s21
    %s25 = sphi 0, %s24
    %s41 = sphi 0, %s25
    %s45 = sphi 0, %s45
    %s47 = sphi 0, %s45
    %s48 = sphi 0, %s47
    %s62 = sphi 0, %s48
    %s66 = sphi 0, %s66
    %s68 = sphi 0, %s66
    %s69 = sphi 0, %s68
    %s83 = sphi 0, %s69
    %s87 = sphi 0, %s87
    %s89 = sphi 0, %s87
    %s90 = sphi 0, %s89
    %s104 = sphi 0, %s90
    %s108 = sphi 0, %s108
    %s110 = sphi 0, %s108
    %s111 = sphi 0, %s110
    %s125 = sphi 0, %s111
    %s131 = sphi 0, %s133
    %s134 = sphi 0, %s131
    %s135 = sphi 0, %s134
    %s151 = sphi 0, %s135
  $region4: #{downsample_v2_forward.2} parent=0 // loop_header_branch
    %14 = sbr.rel (%p12) target = $region8
  $region5: #{downsample_v2_forward.2} parent=0 // loop_body
    %s16 = ssub.s32 %s11, 1
    %s17 = ssub.s32 %s11, 2
    %s18 = sadd.s32 %s11, 1
    %s19 = ssub.s32 %s11, %s18
    %p20 = scmp.eq.s32.totalorder %s19, 0
    %s22 = sadd.s32 %s21, 1
    %s23 = scalar_select %p20, %s21, %s22
    %p26 = pneg %p20
    %p27 = scmp.eq.s32.totalorder %s11, 1
    %p28 = por %p26, %p27
    %p29 = scmp.ne.s32.totalorder %s21, %s24
    %p30 = scmp.eq.s32.totalorder %s11, 0
    %p31 = por %p29, %p30
    %p32 = scmp.ne.s32.totalorder %s21, %s24
    %p33 = scmp.eq.s32.totalorder %s16, 1
    %p34 = por %p32, %p33
    %p35 = scmp.ne.s32.totalorder %s24, %s25
    %p36 = scmp.eq.s32.totalorder %s16, 0
    %p37 = por %p35, %p36
    %p38 = scmp.ne.s32.totalorder %s24, %s25
    %p39 = scmp.eq.s32.totalorder %s17, 1
    %p40 = por %p38, %p39
    %p42 = scmp.ne.s32.totalorder %s25, %s41
    %p43 = scmp.eq.s32.totalorder %s17, 0
    %p44 = por %p42, %p43
    %s46 = sadd.s32 %s45, 1
    %p49 = scmp.eq.s32.totalorder %s11, 1
    %p50 = scmp.ne.s32.totalorder %s45, %s47
    %p51 = scmp.eq.s32.totalorder %s11, 0
    %p52 = por %p50, %p51
    %p53 = scmp.ne.s32.totalorder %s45, %s47
    %p54 = scmp.eq.s32.totalorder %s16, 1
    %p55 = por %p53, %p54
    %p56 = scmp.ne.s32.totalorder %s47, %s48
    %p57 = scmp.eq.s32.totalorder %s16, 0
    %p58 = por %p56, %p57
    %p59 = scmp.ne.s32.totalorder %s47, %s48
    %p60 = scmp.eq.s32.totalorder %s17, 1
    %p61 = por %p59, %p60
    %p63 = scmp.ne.s32.totalorder %s48, %s62
    %p64 = scmp.eq.s32.totalorder %s17, 0
    %p65 = por %p63, %p64
    %s67 = sadd.s32 %s66, 1
    %p70 = scmp.eq.s32.totalorder %s11, 1
    %p71 = scmp.ne.s32.totalorder %s66, %s68
    %p72 = scmp.eq.s32.totalorder %s11, 0
    %p73 = por %p71, %p72
    %p74 = scmp.ne.s32.totalorder %s66, %s68
    %p75 = scmp.eq.s32.totalorder %s16, 1
    %p76 = por %p74, %p75
    %p77 = scmp.ne.s32.totalorder %s68, %s69
    %p78 = scmp.eq.s32.totalorder %s16, 0
    %p79 = por %p77, %p78
    %p80 = scmp.ne.s32.totalorder %s68, %s69
    %p81 = scmp.eq.s32.totalorder %s17, 1
    %p82 = por %p80, %p81
    %p84 = scmp.ne.s32.totalorder %s69, %s83
    %p85 = scmp.eq.s32.totalorder %s17, 0
    %p86 = por %p84, %p85
    %s88 = sadd.s32 %s87, 1
    %p91 = scmp.eq.s32.totalorder %s11, 1
    %p92 = scmp.ne.s32.totalorder %s87, %s89
    %p93 = scmp.eq.s32.totalorder %s11, 0
    %p94 = por %p92, %p93
    %p95 = scmp.ne.s32.totalorder %s87, %s89
    %p96 = scmp.eq.s32.totalorder %s16, 1
    %p97 = por %p95, %p96
    %p98 = scmp.ne.s32.totalorder %s89, %s90
    %p99 = scmp.eq.s32.totalorder %s16, 0
    %p100 = por %p98, %p99
    %p101 = scmp.ne.s32.totalorder %s89, %s90
    %p102 = scmp.eq.s32.totalorder %s17, 1
    %p103 = por %p101, %p102
    %p105 = scmp.ne.s32.totalorder %s90, %s104
    %p106 = scmp.eq.s32.totalorder %s17, 0
    %p107 = por %p105, %p106
    %s109 = sadd.s32 %s108, 1
    %p112 = scmp.eq.s32.totalorder %s11, 1
    %p113 = scmp.ne.s32.totalorder %s108, %s110
    %p114 = scmp.eq.s32.totalorder %s11, 0
    %p115 = por %p113, %p114
    %p116 = scmp.ne.s32.totalorder %s108, %s110
    %p117 = scmp.eq.s32.totalorder %s16, 1
    %p118 = por %p116, %p117
    %p119 = scmp.ne.s32.totalorder %s110, %s111
    %p120 = scmp.eq.s32.totalorder %s16, 0
    %p121 = por %p119, %p120
    %p122 = scmp.ne.s32.totalorder %s110, %s111
    %p123 = scmp.eq.s32.totalorder %s17, 1
    %p124 = por %p122, %p123
    %p126 = scmp.ne.s32.totalorder %s111, %s125
    %p127 = scmp.eq.s32.totalorder %s17, 0
    %p128 = por %p126, %p127
    %s129 = ssub.s32 %s11, %s18
    %p130 = scmp.eq.s32.totalorder %s129, 0
    %s132 = sadd.s32 %s131, 1
    %s133 = scalar_select %p130, %s131, %s132
    %p136 = pneg %p130
    %p137 = scmp.eq.s32.totalorder %s11, 1
    %p138 = por %p136, %p137
    %p139 = scmp.ne.s32.totalorder %s131, %s134
    %p140 = scmp.eq.s32.totalorder %s11, 0
    %p141 = por %p139, %p140
    %p142 = scmp.ne.s32.totalorder %s131, %s134
    %p143 = scmp.eq.s32.totalorder %s16, 1
    %p144 = por %p142, %p143
    %p145 = scmp.ne.s32.totalorder %s134, %s135
    %p146 = scmp.eq.s32.totalorder %s16, 0
    %p147 = por %p145, %p146
    %p148 = scmp.ne.s32.totalorder %s134, %s135
    %p149 = scmp.eq.s32.totalorder %s17, 1
    %p150 = por %p148, %p149
    %p152 = scmp.ne.s32.totalorder %s135, %s151
    %p153 = scmp.eq.s32.totalorder %s17, 0
    %p154 = por %p152, %p153
    %p155 = scmp.le.s32.totalorder 1, %s11
    %p156 = scmp.lt.s32.totalorder %s11, 3
    %p157 = pnand %p155, %p156
    %p158 = pneg %p157
    // Predicated region
    $region9: #{downsample_v2_forward.2} parent=5 // pred_check
      _
    $region10: #{downsample_v2_forward.2} parent=5 // pred_check_branch
      %160 = sbr.rel (%p157) target = $region12
    $region11: #{downsample_v2_forward.2} parent=5 // pred_region
      %s161 = ssub.s32 %s11, 1
      // Predicated region
      $region13: #{downsample_v2_forward.2} parent=11 // pred_check
        %p162 = pneg %p58
      $region14: #{downsample_v2_forward.2} parent=11 // pred_check_branch
        %164 = sbr.rel (%p162) target = $region16
      $region15: #{downsample_v2_forward.2} parent=11 // pred_region
        _
      $region16: #{downsample_v2_forward.2} parent=11 // pred_fallthru
        _
      // Predicated region
      $region17: #{downsample_v2_forward.2} parent=11 // pred_check
        %p165 = pneg %p79
      $region18: #{downsample_v2_forward.2} parent=11 // pred_check_branch
        %167 = sbr.rel (%p165) target = $region20
      $region19: #{downsample_v2_forward.2} parent=11 // pred_region
        _
      $region20: #{downsample_v2_forward.2} parent=11 // pred_fallthru
        _
      // Predicated region
      $region21: #{downsample_v2_forward.2} parent=11 // pred_check
        %p168 = pneg %p100
      $region22: #{downsample_v2_forward.2} parent=11 // pred_check_branch
        %170 = sbr.rel (%p168) target = $region24
      $region23: #{downsample_v2_forward.2} parent=11 // pred_region
        _
      $region24: #{downsample_v2_forward.2} parent=11 // pred_fallthru
        _
      // Predicated region
      $region25: #{downsample_v2_forward.2} parent=11 // pred_check
        %p171 = pneg %p121
      $region26: #{downsample_v2_forward.2} parent=11 // pred_check_branch
        %173 = sbr.rel (%p171) target = $region28
      $region27: #{downsample_v2_forward.2} parent=11 // pred_region
        _
      $region28: #{downsample_v2_forward.2} parent=11 // pred_fallthru
        _
    $region12: #{downsample_v2_forward.2} parent=5 // pred_fallthru
      _
    %p174 = scmp.lt.s32.totalorder %s11, 2
    // Predicated region
    $region29: #{downsample_v2_forward.2} parent=5 // pred_check
      %p175 = pneg %p174
    $region30: #{downsample_v2_forward.2} parent=5 // pred_check_branch
      %177 = sbr.rel (%p175) target = $region32
    $region31: #{downsample_v2_forward.2} parent=5 // pred_region
      // Predicated region
      $region33: #{downsample_v2_forward.2} parent=31 // pred_check
        %p178 = pneg %p31
      $region34: #{downsample_v2_forward.2} parent=31 // pred_check_branch
        %180 = sbr.rel (%p178) target = $region36
      $region35: #{downsample_v2_forward.2} parent=31 // pred_region
        %s181 = smul.u32 32, %s11
        %p182 = scmp.lt.s32.totalorder %s181, 63
        %s183 = scalar_select %p182, %s181, 63
        %s184 = smul.addr %s183, 4
        %s185 = scalar_lea.vmem %s0, %s184
        %s186 = smul.u32 32, %s11
      $region36: #{downsample_v2_forward.2} parent=31 // pred_fallthru
        _
    $region32: #{downsample_v2_forward.2} parent=5 // pred_fallthru
      _
    %p187 = scmp.le.s32.totalorder 1, %s11
    %p188 = scmp.lt.s32.totalorder %s11, 3
    %p189 = pnand %p187, %p188
    %p190 = pneg %p189
    // Predicated region
    $region37: #{downsample_v2_forward.2} parent=5 // pred_check
      _
    $region38: #{downsample_v2_forward.2} parent=5 // pred_check_branch
      %192 = sbr.rel (%p189) target = $region40
    $region39: #{downsample_v2_forward.2} parent=5 // pred_region
      %s193 = ssub.s32 %s11, 1
      %s194 = smul.u32 32, %s16
      %p195 = scmp.lt.s32.totalorder %s194, 63
      %s196 = scalar_select %p195, %s194, 63
      %s197 = smul.addr %s196, 4
      %s198 = scalar_lea.vmem %s0, %s197
      %p199 = pneg %p37
      %p200 = pneg %p34
      %p201 = pneg %p58
      %p202 = pneg %p55
      %p203 = pneg %p79
      %p204 = pneg %p76
      %p205 = pneg %p100
      %p206 = pneg %p97
      %p207 = pneg %p121
      %p208 = pneg %p118
      %p209 = pneg %p147
      %p210 = pneg %p144
      %s211 = smul.u32 32, %s16
      %p212 = scmp.lt.s32.totalorder %s211, 63
      %s213 = scalar_select %p212, %s211, 63
      %s214 = smul.addr %s213, 4
      %s215 = scalar_lea.vmem %s5, %s214
      %s216 = smul.u32 32, %s16
      %p217 = scmp.lt.s32.totalorder %s216, 63
      %s218 = scalar_select %p217, %s216, 63
      %s219 = smul.addr %s218, 4
      %s220 = scalar_lea.vmem %s0, %s219
      %s221 = smul.u32 32, %s16
      %s222 = smul.u32 32, %s16
      %p223 = scmp.lt.s32.totalorder %s222, 63
      %s224 = scalar_select %p223, %s222, 63
      %s225 = smul.addr %s224, 4
      %s226 = scalar_lea.vmem %s5, %s225
      %s227 = smul.u32 32, %s16
      %v229 = vld [vmem:[%s220] sm:$0xf]
      %v230 = vld [vmem:[%s220 + $0x4] sm:$0xf]
      %v231 = vld [vmem:[%s220 + $0x8] sm:$0xf]
      %v232 = vld [vmem:[%s220 + $0xc] sm:$0xf]
      %v233 = vld [vmem:[%s220 + $0x10] sm:$0xf]
      %v234 = vld [vmem:[%s220 + $0x14] sm:$0xf]
      %v235 = vld [vmem:[%s220 + $0x18] sm:$0xf]
      %v236 = vld [vmem:[%s220 + $0x1c] sm:$0xf]
      %v237 = vld [vmem:[%s220 + $0x20] sm:$0xf]
      %v238 = vld [vmem:[%s220 + $0x24] sm:$0xf]
      %v239 = vld [vmem:[%s220 + $0x28] sm:$0xf]
      %v240 = vld [vmem:[%s220 + $0x2c] sm:$0xf]
      %v241 = vld [vmem:[%s220 + $0x30] sm:$0xf]
      %v242 = vld [vmem:[%s220 + $0x34] sm:$0xf]
      %v243 = vld [vmem:[%s220 + $0x38] sm:$0xf]
      %v244 = vld [vmem:[%s220 + $0x3c] sm:$0xf]
      %v245 = vld [vmem:[%s220 + $0x40] sm:$0xf]
      %v246 = vld [vmem:[%s220 + $0x44] sm:$0xf]
      %v247 = vld [vmem:[%s220 + $0x48] sm:$0xf]
      %v248 = vld [vmem:[%s220 + $0x4c] sm:$0xf]
      %v249 = vld [vmem:[%s220 + $0x50] sm:$0xf]
      %v250 = vld [vmem:[%s220 + $0x54] sm:$0xf]
      %v251 = vld [vmem:[%s220 + $0x58] sm:$0xf]
      %v252 = vld [vmem:[%s220 + $0x5c] sm:$0xf]
      %v253 = vld [vmem:[%s220 + $0x60] sm:$0xf]
      %v254 = vld [vmem:[%s220 + $0x64] sm:$0xf]
      %v255 = vld [vmem:[%s220 + $0x68] sm:$0xf]
      %v256 = vld [vmem:[%s220 + $0x6c] sm:$0xf]
      %v257 = vld [vmem:[%s220 + $0x70] sm:$0xf]
      %v258 = vld [vmem:[%s220 + $0x74] sm:$0xf]
      %v259 = vld [vmem:[%s220 + $0x78] sm:$0xf]
      %v260 = vld [vmem:[%s220 + $0x7c] sm:$0xf]
      %v261 = vld [vmem:[%s1] sm:$0xf]
      %v262 = vld [vmem:[%s1 + $0x4] sm:$0xf]
      %v263 = vld [vmem:[%s1 + $0x8] sm:$0xf]
      %v264 = vld [vmem:[%s1 + $0xc] sm:$0xf]
      %v265 = vld [vmem:[%s2] sm:$0x1]
      %v267 = vlaneseq
      %v268 = vshrl.u32 %v267, 7
      %v269 = vsub.s32 0, %v268
      %v270 = vrot.slane %v265, %v269
      %v304 = vunpack.c.l.b16 %v229
      %v305 = vunpack.c.l.b16 %v230
      %v306 = vunpack.c.l.b16 %v231
      %v307 = vunpack.c.l.b16 %v232
      %v308 = vunpack.c.l.b16 %v233
      %v309 = vunpack.c.l.b16 %v234
      %v310 = vunpack.c.l.b16 %v235
      %v311 = vunpack.c.l.b16 %v236
      %v312 = vunpack.c.l.b16 %v237
      %v313 = vunpack.c.l.b16 %v238
      %v314 = vunpack.c.l.b16 %v239
      %v315 = vunpack.c.l.b16 %v240
      %v316 = vunpack.c.l.b16 %v241
      %v317 = vunpack.c.l.b16 %v242
      %v318 = vunpack.c.l.b16 %v243
      %v319 = vunpack.c.l.b16 %v244
      %v320 = vunpack.c.l.b16 %v245
      %v321 = vunpack.c.l.b16 %v246
      %v322 = vunpack.c.l.b16 %v247
      %v323 = vunpack.c.l.b16 %v248
      %v324 = vunpack.c.l.b16 %v249
      %v325 = vunpack.c.l.b16 %v250
      %v326 = vunpack.c.l.b16 %v251
      %v327 = vunpack.c.l.b16 %v252
      %v328 = vunpack.c.l.b16 %v253
      %v329 = vunpack.c.l.b16 %v254
      %v330 = vunpack.c.l.b16 %v255
      %v331 = vunpack.c.l.b16 %v256
      %v332 = vunpack.c.l.b16 %v257
      %v333 = vunpack.c.l.b16 %v258
      %v334 = vunpack.c.l.b16 %v259
      %v335 = vunpack.c.l.b16 %v260
      %v336 = vpack.c.b16 %v305, %v304
      %v337 = vpack.c.b16 %v307, %v306
      %v338 = vpack.c.b16 %v309, %v308
      %v339 = vpack.c.b16 %v311, %v310
      %v340 = vpack.c.b16 %v313, %v312
      %v341 = vpack.c.b16 %v315, %v314
      %v342 = vpack.c.b16 %v317, %v316
      %v343 = vpack.c.b16 %v319, %v318
      %v344 = vpack.c.b16 %v321, %v320
      %v345 = vpack.c.b16 %v323, %v322
      %v346 = vpack.c.b16 %v325, %v324
      %v347 = vpack.c.b16 %v327, %v326
      %v348 = vpack.c.b16 %v329, %v328
      %v349 = vpack.c.b16 %v331, %v330
      %v350 = vpack.c.b16 %v333, %v332
      %v351 = vpack.c.b16 %v335, %v334
      %v356 = vunpack.c.l.b16 %v261
      %v357 = vunpack.c.l.b16 %v262
      %v358 = vunpack.c.l.b16 %v263
      %v359 = vunpack.c.l.b16 %v264
      %v360 = vpack.c.b16 %v357, %v356
      %v361 = vpack.c.b16 %v359, %v358
      %vm364 = vcmask 261120
      %v366 = vsel %vm364, %v336, 0
      %v369 = vsel %vm364, %v337, 0
      %v372 = vsel %vm364, %v338, 0
      %v375 = vsel %vm364, %v339, 0
      %v378 = vsel %vm364, %v340, 0
      %v381 = vsel %vm364, %v341, 0
      %v384 = vsel %vm364, %v342, 0
      %v387 = vsel %vm364, %v343, 0
      %v390 = vsel %vm364, %v344, 0
      %v393 = vsel %vm364, %v345, 0
      %v396 = vsel %vm364, %v346, 0
      %v399 = vsel %vm364, %v347, 0
      %v402 = vsel %vm364, %v348, 0
      %v405 = vsel %vm364, %v349, 0
      %v408 = vsel %vm364, %v350, 0
      %v411 = vsel %vm364, %v351, 0
      %413 = vmatprep.subr.bf16.mxu0 0
      %414 = vmatpush1.bf16.msra.mxu0 %v360
      %415 = vmatprep.subr.bf16.mxu0 0
      %416 = vmatpush1.bf16.msra.mxu0 %v361
      %417 = vmatprep.subr.bf16.mxu0 0
      %418 = vmatpush1.bf16.msra.mxu0 0
      %419 = vmatprep.subr.bf16.mxu0 0
      %420 = vmatpush1.bf16.msra.mxu0 0
      %421 = vmatprep.subr.bf16.mxu0 0
      %422 = vmatpush1.bf16.msra.mxu0 0
      %423 = vmatprep.subr.bf16.mxu0 0
      %424 = vmatpush1.bf16.msra.mxu0 0
      %425 = vmatprep.subr.bf16.mxu0 0
      %426 = vmatpush1.bf16.msra.mxu0 0
      %427 = vmatprep.subr.bf16.mxu0 0
      %428 = vmatpush1.bf16.msra.mxu0 0
      %429 = vmatprep.subr.bf16.mxu0 0
      %430 = vmatpush1.bf16.msra.mxu0 0
      %431 = vmatprep.subr.bf16.mxu0 0
      %432 = vmatpush1.bf16.msra.mxu0 0
      %433 = vmatprep.subr.bf16.mxu0 0
      %434 = vmatpush1.bf16.msra.mxu0 0
      %435 = vmatprep.subr.bf16.mxu0 0
      %436 = vmatpush1.bf16.msra.mxu0 0
      %437 = vmatprep.subr.bf16.mxu0 0
      %438 = vmatpush1.bf16.msra.mxu0 0
      %439 = vmatprep.subr.bf16.mxu0 0
      %440 = vmatpush1.bf16.msra.mxu0 0
      %441 = vmatprep.subr.bf16.mxu0 0
      %442 = vmatpush1.bf16.msra.mxu0 0
      %443 = vmatprep.subr.bf16.mxu0 0
      %444 = vmatpush1.bf16.msra.mxu0 0
      %445 = vmatprep.mubr.bf16.mxu0 0
      %446 = vmatmul.mubr.bf16.gmra.mrb[0].mxu0 %v366
      %v447 = vpop.f32.mrb[0].mxu0
      %v448 = vadd.f32 %v270, %v447
      %v449 = vpop.f32.mrb[0].mxu0
      %v450 = vpop.f32.mrb[0].mxu0
      %v451 = vadd.f32 %v270, %v450
      %v452 = vpop.f32.mrb[0].mxu0
      %453 = vmatprep.mubr.bf16.mxu0 0
      %454 = vmatmul.mubr.bf16.gmra.mrb[0].mxu0 %v369
      %v455 = vpop.f32.mrb[0].mxu0
      %v456 = vadd.f32 %v270, %v455
      %v457 = vpop.f32.mrb[0].mxu0
      %v458 = vpop.f32.mrb[0].mxu0
      %v459 = vadd.f32 %v270, %v458
      %v460 = vpop.f32.mrb[0].mxu0
      %461 = vmatprep.mubr.bf16.mxu0 0
      %462 = vmatmul.mubr.bf16.gmra.mrb[0].mxu0 %v372
      %v463 = vpop.f32.mrb[0].mxu0
      %v464 = vadd.f32 %v270, %v463
      %v465 = vpop.f32.mrb[0].mxu0
      %v466 = vpop.f32.mrb[0].mxu0
      %v467 = vadd.f32 %v270, %v466
      %v468 = vpop.f32.mrb[0].mxu0
      %469 = vmatprep.mubr.bf16.mxu0 0
      %470 = vmatmul.mubr.bf16.gmra.mrb[0].mxu0 %v375
      %v471 = vpop.f32.mrb[0].mxu0
      %v472 = vadd.f32 %v270, %v471
      %v473 = vpop.f32.mrb[0].mxu0
      %v474 = vpop.f32.mrb[0].mxu0
      %v475 = vadd.f32 %v270, %v474
      %v476 = vpop.f32.mrb[0].mxu0
      %477 = vmatprep.mubr.bf16.mxu0 0
      %478 = vmatmul.mubr.bf16.gmra.mrb[0].mxu0 %v378
      %v479 = vpop.f32.mrb[0].mxu0
      %v480 = vadd.f32 %v270, %v479
      %v481 = vpop.f32.mrb[0].mxu0
      %v482 = vpop.f32.mrb[0].mxu0
      %v483 = vadd.f32 %v270, %v482
      %v484 = vpop.f32.mrb[0].mxu0
      %485 = vmatprep.mubr.bf16.mxu0 0
      %486 = vmatmul.mubr.bf16.gmra.mrb[0].mxu0 %v381
      %v487 = vpop.f32.mrb[0].mxu0
      %v488 = vadd.f32 %v270, %v487
      %v489 = vpop.f32.mrb[0].mxu0
      %v490 = vpop.f32.mrb[0].mxu0
      %v491 = vadd.f32 %v270, %v490
      %v492 = vpop.f32.mrb[0].mxu0
      %493 = vmatprep.mubr.bf16.mxu0 0
      %494 = vmatmul.mubr.bf16.gmra.mrb[0].mxu0 %v384
      %v495 = vpop.f32.mrb[0].mxu0
      %v496 = vadd.f32 %v270, %v495
      %v497 = vpop.f32.mrb[0].mxu0
      %v498 = vpop.f32.mrb[0].mxu0
      %v499 = vadd.f32 %v270, %v498
      %v500 = vpop.f32.mrb[0].mxu0
      %501 = vmatprep.mubr.bf16.mxu0 0
      %502 = vmatmul.mubr.bf16.gmra.mrb[0].mxu0 %v387
      %v503 = vpop.f32.mrb[0].mxu0
      %v504 = vadd.f32 %v270, %v503
      %v505 = vpop.f32.mrb[0].mxu0
      %v506 = vpop.f32.mrb[0].mxu0
      %v507 = vadd.f32 %v270, %v506
      %v508 = vpop.f32.mrb[0].mxu0
      %509 = vmatprep.mubr.bf16.mxu0 0
      %510 = vmatmul.mubr.bf16.gmra.mrb[0].mxu0 %v390
      %v511 = vpop.f32.mrb[0].mxu0
      %v512 = vadd.f32 %v270, %v511
      %v513 = vpop.f32.mrb[0].mxu0
      %v514 = vpop.f32.mrb[0].mxu0
      %v515 = vadd.f32 %v270, %v514
      %v516 = vpop.f32.mrb[0].mxu0
      %517 = vmatprep.mubr.bf16.mxu0 0
      %518 = vmatmul.mubr.bf16.gmra.mrb[0].mxu0 %v393
      %v519 = vpop.f32.mrb[0].mxu0
      %v520 = vadd.f32 %v270, %v519
      %v521 = vpop.f32.mrb[0].mxu0
      %v522 = vpop.f32.mrb[0].mxu0
      %v523 = vadd.f32 %v270, %v522
      %v524 = vpop.f32.mrb[0].mxu0
      %525 = vmatprep.mubr.bf16.mxu0 0
      %526 = vmatmul.mubr.bf16.gmra.mrb[0].mxu0 %v396
      %v527 = vpop.f32.mrb[0].mxu0
      %v528 = vadd.f32 %v270, %v527
      %v529 = vpop.f32.mrb[0].mxu0
      %v530 = vpop.f32.mrb[0].mxu0
      %v531 = vadd.f32 %v270, %v530
      %v532 = vpop.f32.mrb[0].mxu0
      %533 = vmatprep.mubr.bf16.mxu0 0
      %534 = vmatmul.mubr.bf16.gmra.mrb[0].mxu0 %v399
      %v535 = vpop.f32.mrb[0].mxu0
      %v536 = vadd.f32 %v270, %v535
      %v537 = vpop.f32.mrb[0].mxu0
      %v538 = vpop.f32.mrb[0].mxu0
      %v539 = vadd.f32 %v270, %v538
      %v540 = vpop.f32.mrb[0].mxu0
      %541 = vmatprep.mubr.bf16.mxu0 0
      %542 = vmatmul.mubr.bf16.gmra.mrb[0].mxu0 %v402
      %v543 = vpop.f32.mrb[0].mxu0
      %v544 = vadd.f32 %v270, %v543
      %v545 = vpop.f32.mrb[0].mxu0
      %v546 = vpop.f32.mrb[0].mxu0
      %v547 = vadd.f32 %v270, %v546
      %v548 = vpop.f32.mrb[0].mxu0
      %549 = vmatprep.mubr.bf16.mxu0 0
      %550 = vmatmul.mubr.bf16.gmra.mrb[0].mxu0 %v405
      %v551 = vpop.f32.mrb[0].mxu0
      %v552 = vadd.f32 %v270, %v551
      %v553 = vpop.f32.mrb[0].mxu0
      %v554 = vpop.f32.mrb[0].mxu0
      %v555 = vadd.f32 %v270, %v554
      %v556 = vpop.f32.mrb[0].mxu0
      %557 = vmatprep.mubr.bf16.mxu0 0
      %558 = vmatmul.mubr.bf16.gmra.mrb[0].mxu0 %v408
      %v559 = vpop.f32.mrb[0].mxu0
      %v560 = vadd.f32 %v270, %v559
      %v561 = vpop.f32.mrb[0].mxu0
      %v562 = vpop.f32.mrb[0].mxu0
      %v563 = vadd.f32 %v270, %v562
      %v564 = vpop.f32.mrb[0].mxu0
      %565 = vmatprep.mubr.bf16.mxu0 0
      %566 = vmatmul.mubr.bf16.gmra.mrb[0].mxu0 %v411
      %v567 = vpop.f32.mrb[0].mxu0
      %v568 = vadd.f32 %v270, %v567
      %v569 = vpop.f32.mrb[0].mxu0
      %v570 = vpop.f32.mrb[0].mxu0
      %v571 = vadd.f32 %v270, %v570
      %v572 = vpop.f32.mrb[0].mxu0
      %573 = vdwg.mxu0
      %v574 = vlaneseq
      %v575 = vand.u32 %v574, 127
      %vm576 = vcmp.lt.s32.totalorder %v575, 32
      %577 = vadd.xlane.f32.xlu0 %v448
      %v578 = vpop.xlane.xlu0 %577
      %579 = vadd.xlane.f32.xlu0 %v451
      %v580 = vpop.xlane.xlu0 %579
      %581 = vadd.xlane.f32.xlu0 %v456
      %v582 = vpop.xlane.xlu0 %581
      %583 = vadd.xlane.f32.xlu0 %v459
      %v584 = vpop.xlane.xlu0 %583
      %585 = vadd.xlane.f32.xlu0 %v464
      %v586 = vpop.xlane.xlu0 %585
      %587 = vadd.xlane.f32.xlu0 %v467
      %v588 = vpop.xlane.xlu0 %587
      %589 = vadd.xlane.f32.xlu0 %v472
      %v590 = vpop.xlane.xlu0 %589
      %591 = vadd.xlane.f32.xlu0 %v475
      %v592 = vpop.xlane.xlu0 %591
      %593 = vadd.xlane.f32.xlu0 %v480
      %v594 = vpop.xlane.xlu0 %593
      %595 = vadd.xlane.f32.xlu0 %v483
      %v596 = vpop.xlane.xlu0 %595
      %597 = vadd.xlane.f32.xlu0 %v488
      %v598 = vpop.xlane.xlu0 %597
      %599 = vadd.xlane.f32.xlu0 %v491
      %v600 = vpop.xlane.xlu0 %599
      %601 = vadd.xlane.f32.xlu0 %v496
      %v602 = vpop.xlane.xlu0 %601
      %603 = vadd.xlane.f32.xlu0 %v499
      %v604 = vpop.xlane.xlu0 %603
      %605 = vadd.xlane.f32.xlu0 %v504
      %v606 = vpop.xlane.xlu0 %605
      %607 = vadd.xlane.f32.xlu0 %v507
      %v608 = vpop.xlane.xlu0 %607
      %609 = vadd.xlane.f32.xlu0 %v512
      %v610 = vpop.xlane.xlu0 %609
      %611 = vadd.xlane.f32.xlu0 %v515
      %v612 = vpop.xlane.xlu0 %611
      %613 = vadd.xlane.f32.xlu0 %v520
      %v614 = vpop.xlane.xlu0 %613
      %615 = vadd.xlane.f32.xlu0 %v523
      %v616 = vpop.xlane.xlu0 %615
      %617 = vadd.xlane.f32.xlu0 %v528
      %v618 = vpop.xlane.xlu0 %617
      %619 = vadd.xlane.f32.xlu0 %v531
      %v620 = vpop.xlane.xlu0 %619
      %621 = vadd.xlane.f32.xlu0 %v536
      %v622 = vpop.xlane.xlu0 %621
      %623 = vadd.xlane.f32.xlu0 %v539
      %v624 = vpop.xlane.xlu0 %623
      %625 = vadd.xlane.f32.xlu0 %v544
      %v626 = vpop.xlane.xlu0 %625
      %627 = vadd.xlane.f32.xlu0 %v547
      %v628 = vpop.xlane.xlu0 %627
      %629 = vadd.xlane.f32.xlu0 %v552
      %v630 = vpop.xlane.xlu0 %629
      %631 = vadd.xlane.f32.xlu0 %v555
      %v632 = vpop.xlane.xlu0 %631
      %633 = vadd.xlane.f32.xlu0 %v560
      %v634 = vpop.xlane.xlu0 %633
      %635 = vadd.xlane.f32.xlu0 %v563
      %v636 = vpop.xlane.xlu0 %635
      %637 = vadd.xlane.f32.xlu0 %v568
      %v638 = vpop.xlane.xlu0 %637
      %639 = vadd.xlane.f32.xlu0 %v571
      %v640 = vpop.xlane.xlu0 %639
      %v641 = vmul.f32 %v578, 0.03125
      %v642 = vmul.f32 %v580, 0.03125
      %v643 = vmul.f32 %v582, 0.03125
      %v644 = vmul.f32 %v584, 0.03125
      %v645 = vmul.f32 %v586, 0.03125
      %v646 = vmul.f32 %v588, 0.03125
      %v647 = vmul.f32 %v590, 0.03125
      %v648 = vmul.f32 %v592, 0.03125
      %v649 = vmul.f32 %v594, 0.03125
      %v650 = vmul.f32 %v596, 0.03125
      %v651 = vmul.f32 %v598, 0.03125
      %v652 = vmul.f32 %v600, 0.03125
      %v653 = vmul.f32 %v602, 0.03125
      %v654 = vmul.f32 %v604, 0.03125
      %v655 = vmul.f32 %v606, 0.03125
      %v656 = vmul.f32 %v608, 0.03125
      %v657 = vmul.f32 %v610, 0.03125
      %v658 = vmul.f32 %v612, 0.03125
      %v659 = vmul.f32 %v614, 0.03125
      %v660 = vmul.f32 %v616, 0.03125
      %v661 = vmul.f32 %v618, 0.03125
      %v662 = vmul.f32 %v620, 0.03125
      %v663 = vmul.f32 %v622, 0.03125
      %v664 = vmul.f32 %v624, 0.03125
      %v665 = vmul.f32 %v626, 0.03125
      %v666 = vmul.f32 %v628, 0.03125
      %v667 = vmul.f32 %v630, 0.03125
      %v668 = vmul.f32 %v632, 0.03125
      %v669 = vmul.f32 %v634, 0.03125
      %v670 = vmul.f32 %v636, 0.03125
      %v671 = vmul.f32 %v638, 0.03125
      %v672 = vmul.f32 %v640, 0.03125
      %v673 = vsub.f32 %v448, %v641
      %v674 = vsub.f32 %v451, %v642
      %v675 = vsub.f32 %v456, %v643
      %v676 = vsub.f32 %v459, %v644
      %v677 = vsub.f32 %v464, %v645
      %v678 = vsub.f32 %v467, %v646
      %v679 = vsub.f32 %v472, %v647
      %v680 = vsub.f32 %v475, %v648
      %v681 = vsub.f32 %v480, %v649
      %v682 = vsub.f32 %v483, %v650
      %v683 = vsub.f32 %v488, %v651
      %v684 = vsub.f32 %v491, %v652
      %v685 = vsub.f32 %v496, %v653
      %v686 = vsub.f32 %v499, %v654
      %v687 = vsub.f32 %v504, %v655
      %v688 = vsub.f32 %v507, %v656
      %v689 = vsub.f32 %v512, %v657
      %v690 = vsub.f32 %v515, %v658
      %v691 = vsub.f32 %v520, %v659
      %v692 = vsub.f32 %v523, %v660
      %v693 = vsub.f32 %v528, %v661
      %v694 = vsub.f32 %v531, %v662
      %v695 = vsub.f32 %v536, %v663
      %v696 = vsub.f32 %v539, %v664
      %v697 = vsub.f32 %v544, %v665
      %v698 = vsub.f32 %v547, %v666
      %v699 = vsub.f32 %v552, %v667
      %v700 = vsub.f32 %v555, %v668
      %v701 = vsub.f32 %v560, %v669
      %v702 = vsub.f32 %v563, %v670
      %v703 = vsub.f32 %v568, %v671
      %v704 = vsub.f32 %v571, %v672
      %v705 = vsel %vm576, %v673, 0.0
      %v706 = vsel %vm576, %v674, 0.0
      %v707 = vsel %vm576, %v675, 0.0
      %v708 = vsel %vm576, %v676, 0.0
      %v709 = vsel %vm576, %v677, 0.0
      %v710 = vsel %vm576, %v678, 0.0
      %v711 = vsel %vm576, %v679, 0.0
      %v712 = vsel %vm576, %v680, 0.0
      %v713 = vsel %vm576, %v681, 0.0
      %v714 = vsel %vm576, %v682, 0.0
      %v715 = vsel %vm576, %v683, 0.0
      %v716 = vsel %vm576, %v684, 0.0
      %v717 = vsel %vm576, %v685, 0.0
      %v718 = vsel %vm576, %v686, 0.0
      %v719 = vsel %vm576, %v687, 0.0
      %v720 = vsel %vm576, %v688, 0.0
      %v721 = vsel %vm576, %v689, 0.0
      %v722 = vsel %vm576, %v690, 0.0
      %v723 = vsel %vm576, %v691, 0.0
      %v724 = vsel %vm576, %v692, 0.0
      %v725 = vsel %vm576, %v693, 0.0
      %v726 = vsel %vm576, %v694, 0.0
      %v727 = vsel %vm576, %v695, 0.0
      %v728 = vsel %vm576, %v696, 0.0
      %v729 = vsel %vm576, %v697, 0.0
      %v730 = vsel %vm576, %v698, 0.0
      %v731 = vsel %vm576, %v699, 0.0
      %v732 = vsel %vm576, %v700, 0.0
      %v733 = vsel %vm576, %v701, 0.0
      %v734 = vsel %vm576, %v702, 0.0
      %v735 = vsel %vm576, %v703, 0.0
      %v736 = vsel %vm576, %v704, 0.0
      %v737 = vmul.f32 %v705, %v705
      %v738 = vmul.f32 %v706, %v706
      %v739 = vmul.f32 %v707, %v707
      %v740 = vmul.f32 %v708, %v708
      %v741 = vmul.f32 %v709, %v709
      %v742 = vmul.f32 %v710, %v710
      %v743 = vmul.f32 %v711, %v711
      %v744 = vmul.f32 %v712, %v712
      %v745 = vmul.f32 %v713, %v713
      %v746 = vmul.f32 %v714, %v714
      %v747 = vmul.f32 %v715, %v715
      %v748 = vmul.f32 %v716, %v716
      %v749 = vmul.f32 %v717, %v717
      %v750 = vmul.f32 %v718, %v718
      %v751 = vmul.f32 %v719, %v719
      %v752 = vmul.f32 %v720, %v720
      %v753 = vmul.f32 %v721, %v721
      %v754 = vmul.f32 %v722, %v722
      %v755 = vmul.f32 %v723, %v723
      %v756 = vmul.f32 %v724, %v724
      %v757 = vmul.f32 %v725, %v725
      %v758 = vmul.f32 %v726, %v726
      %v759 = vmul.f32 %v727, %v727
      %v760 = vmul.f32 %v728, %v728
      %v761 = vmul.f32 %v729, %v729
      %v762 = vmul.f32 %v730, %v730
      %v763 = vmul.f32 %v731, %v731
      %v764 = vmul.f32 %v732, %v732
      %v765 = vmul.f32 %v733, %v733
      %v766 = vmul.f32 %v734, %v734
      %v767 = vmul.f32 %v735, %v735
      %v768 = vmul.f32 %v736, %v736
      %769 = vadd.xlane.f32.xlu0 %v737
      %v770 = vpop.xlane.xlu0 %769
      %771 = vadd.xlane.f32.xlu0 %v738
      %v772 = vpop.xlane.xlu0 %771
      %773 = vadd.xlane.f32.xlu0 %v739
      %v774 = vpop.xlane.xlu0 %773
      %775 = vadd.xlane.f32.xlu0 %v740
      %v776 = vpop.xlane.xlu0 %775
      %777 = vadd.xlane.f32.xlu0 %v741
      %v778 = vpop.xlane.xlu0 %777
      %779 = vadd.xlane.f32.xlu0 %v742
      %v780 = vpop.xlane.xlu0 %779
      %781 = vadd.xlane.f32.xlu0 %v743
      %v782 = vpop.xlane.xlu0 %781
      %783 = vadd.xlane.f32.xlu0 %v744
      %v784 = vpop.xlane.xlu0 %783
      %785 = vadd.xlane.f32.xlu0 %v745
      %v786 = vpop.xlane.xlu0 %785
      %787 = vadd.xlane.f32.xlu0 %v746
      %v788 = vpop.xlane.xlu0 %787
      %789 = vadd.xlane.f32.xlu0 %v747
      %v790 = vpop.xlane.xlu0 %789
      %791 = vadd.xlane.f32.xlu0 %v748
      %v792 = vpop.xlane.xlu0 %791
      %793 = vadd.xlane.f32.xlu0 %v749
      %v794 = vpop.xlane.xlu0 %793
      %795 = vadd.xlane.f32.xlu0 %v750
      %v796 = vpop.xlane.xlu0 %795
      %797 = vadd.xlane.f32.xlu0 %v751
      %v798 = vpop.xlane.xlu0 %797
      %799 = vadd.xlane.f32.xlu0 %v752
      %v800 = vpop.xlane.xlu0 %799
      %801 = vadd.xlane.f32.xlu0 %v753
      %v802 = vpop.xlane.xlu0 %801
      %803 = vadd.xlane.f32.xlu0 %v754
      %v804 = vpop.xlane.xlu0 %803
      %805 = vadd.xlane.f32.xlu0 %v755
      %v806 = vpop.xlane.xlu0 %805
      %807 = vadd.xlane.f32.xlu0 %v756
      %v808 = vpop.xlane.xlu0 %807
      %809 = vadd.xlane.f32.xlu0 %v757
      %v810 = vpop.xlane.xlu0 %809
      %811 = vadd.xlane.f32.xlu0 %v758
      %v812 = vpop.xlane.xlu0 %811
      %813 = vadd.xlane.f32.xlu0 %v759
      %v814 = vpop.xlane.xlu0 %813
      %815 = vadd.xlane.f32.xlu0 %v760
      %v816 = vpop.xlane.xlu0 %815
      %817 = vadd.xlane.f32.xlu0 %v761
      %v818 = vpop.xlane.xlu0 %817
      %819 = vadd.xlane.f32.xlu0 %v762
      %v820 = vpop.xlane.xlu0 %819
      %821 = vadd.xlane.f32.xlu0 %v763
      %v822 = vpop.xlane.xlu0 %821
      %823 = vadd.xlane.f32.xlu0 %v764
      %v824 = vpop.xlane.xlu0 %823
      %825 = vadd.xlane.f32.xlu0 %v765
      %v826 = vpop.xlane.xlu0 %825
      %827 = vadd.xlane.f32.xlu0 %v766
      %v828 = vpop.xlane.xlu0 %827
      %829 = vadd.xlane.f32.xlu0 %v767
      %v830 = vpop.xlane.xlu0 %829
      %831 = vadd.xlane.f32.xlu0 %v768
      %v832 = vpop.xlane.xlu0 %831
      %v833 = vmul.f32 %v770, 0.03125
      %v834 = vmul.f32 %v772, 0.03125
      %v835 = vmul.f32 %v774, 0.03125
      %v836 = vmul.f32 %v776, 0.03125
      %v837 = vmul.f32 %v778, 0.03125
      %v838 = vmul.f32 %v780, 0.03125
      %v839 = vmul.f32 %v782, 0.03125
      %v840 = vmul.f32 %v784, 0.03125
      %v841 = vmul.f32 %v786, 0.03125
      %v842 = vmul.f32 %v788, 0.03125
      %v843 = vmul.f32 %v790, 0.03125
      %v844 = vmul.f32 %v792, 0.03125
      %v845 = vmul.f32 %v794, 0.03125
      %v846 = vmul.f32 %v796, 0.03125
      %v847 = vmul.f32 %v798, 0.03125
      %v848 = vmul.f32 %v800, 0.03125
      %v849 = vmul.f32 %v802, 0.03125
      %v850 = vmul.f32 %v804, 0.03125
      %v851 = vmul.f32 %v806, 0.03125
      %v852 = vmul.f32 %v808, 0.03125
      %v853 = vmul.f32 %v810, 0.03125
      %v854 = vmul.f32 %v812, 0.03125
      %v855 = vmul.f32 %v814, 0.03125
      %v856 = vmul.f32 %v816, 0.03125
      %v857 = vmul.f32 %v818, 0.03125
      %v858 = vmul.f32 %v820, 0.03125
      %v859 = vmul.f32 %v822, 0.03125
      %v860 = vmul.f32 %v824, 0.03125
      %v861 = vmul.f32 %v826, 0.03125
      %v862 = vmul.f32 %v828, 0.03125
      %v863 = vmul.f32 %v830, 0.03125
      %v864 = vmul.f32 %v832, 0.03125
      %v865 = vadd.f32 %v833, 1e-06
      %v866 = vadd.f32 %v834, 1e-06
      %v867 = vadd.f32 %v835, 1e-06
      %v868 = vadd.f32 %v836, 1e-06
      %v869 = vadd.f32 %v837, 1e-06
      %v870 = vadd.f32 %v838, 1e-06
      %v871 = vadd.f32 %v839, 1e-06
      %v872 = vadd.f32 %v840, 1e-06
      %v873 = vadd.f32 %v841, 1e-06
      %v874 = vadd.f32 %v842, 1e-06
      %v875 = vadd.f32 %v843, 1e-06
      %v876 = vadd.f32 %v844, 1e-06
      %v877 = vadd.f32 %v845, 1e-06
      %v878 = vadd.f32 %v846, 1e-06
      %v879 = vadd.f32 %v847, 1e-06
      %v880 = vadd.f32 %v848, 1e-06
      %v881 = vadd.f32 %v849, 1e-06
      %v882 = vadd.f32 %v850, 1e-06
      %v883 = vadd.f32 %v851, 1e-06
      %v884 = vadd.f32 %v852, 1e-06
      %v885 = vadd.f32 %v853, 1e-06
      %v886 = vadd.f32 %v854, 1e-06
      %v887 = vadd.f32 %v855, 1e-06
      %v888 = vadd.f32 %v856, 1e-06
      %v889 = vadd.f32 %v857, 1e-06
      %v890 = vadd.f32 %v858, 1e-06
      %v891 = vadd.f32 %v859, 1e-06
      %v892 = vadd.f32 %v860, 1e-06
      %v893 = vadd.f32 %v861, 1e-06
      %v894 = vadd.f32 %v862, 1e-06
      %v895 = vadd.f32 %v863, 1e-06
      %v896 = vadd.f32 %v864, 1e-06
      %v897 = vrsqrt.pop %v865
      %v898 = vrsqrt.pop %v866
      %v899 = vrsqrt.pop %v867
      %v900 = vrsqrt.pop %v868
      %v901 = vrsqrt.pop %v869
      %v902 = vrsqrt.pop %v870
      %v903 = vrsqrt.pop %v871
      %v904 = vrsqrt.pop %v872
      %v905 = vrsqrt.pop %v873
      %v906 = vrsqrt.pop %v874
      %v907 = vrsqrt.pop %v875
      %v908 = vrsqrt.pop %v876
      %v909 = vrsqrt.pop %v877
      %v910 = vrsqrt.pop %v878
      %v911 = vrsqrt.pop %v879
      %v912 = vrsqrt.pop %v880
      %v913 = vrsqrt.pop %v881
      %v914 = vrsqrt.pop %v882
      %v915 = vrsqrt.pop %v883
      %v916 = vrsqrt.pop %v884
      %v917 = vrsqrt.pop %v885
      %v918 = vrsqrt.pop %v886
      %v919 = vrsqrt.pop %v887
      %v920 = vrsqrt.pop %v888
      %v921 = vrsqrt.pop %v889
      %v922 = vrsqrt.pop %v890
      %v923 = vrsqrt.pop %v891
      %v924 = vrsqrt.pop %v892
      %v925 = vrsqrt.pop %v893
      %v926 = vrsqrt.pop %v894
      %v927 = vrsqrt.pop %v895
      %v928 = vrsqrt.pop %v896
      %v929 = vmul.f32 %v705, %v897
      %v930 = vmul.f32 %v706, %v898
      %v931 = vmul.f32 %v707, %v899
      %v932 = vmul.f32 %v708, %v900
      %v933 = vmul.f32 %v709, %v901
      %v934 = vmul.f32 %v710, %v902
      %v935 = vmul.f32 %v711, %v903
      %v936 = vmul.f32 %v712, %v904
      %v937 = vmul.f32 %v713, %v905
      %v938 = vmul.f32 %v714, %v906
      %v939 = vmul.f32 %v715, %v907
      %v940 = vmul.f32 %v716, %v908
      %v941 = vmul.f32 %v717, %v909
      %v942 = vmul.f32 %v718, %v910
      %v943 = vmul.f32 %v719, %v911
      %v944 = vmul.f32 %v720, %v912
      %v945 = vmul.f32 %v721, %v913
      %v946 = vmul.f32 %v722, %v914
      %v947 = vmul.f32 %v723, %v915
      %v948 = vmul.f32 %v724, %v916
      %v949 = vmul.f32 %v725, %v917
      %v950 = vmul.f32 %v726, %v918
      %v951 = vmul.f32 %v727, %v919
      %v952 = vmul.f32 %v728, %v920
      %v953 = vmul.f32 %v729, %v921
      %v954 = vmul.f32 %v730, %v922
      %v955 = vmul.f32 %v731, %v923
      %v956 = vmul.f32 %v732, %v924
      %v957 = vmul.f32 %v733, %v925
      %v958 = vmul.f32 %v734, %v926
      %v959 = vmul.f32 %v735, %v927
      %v960 = vmul.f32 %v736, %v928
      %v961 = vld [vmem:[%s3] sm:$0x1]
      %v963 = vlaneseq
      %v964 = vshrl.u32 %v963, 7
      %v965 = vsub.s32 0, %v964
      %v966 = vrot.slane %v961, %v965
      %v968 = vmul.f32 %v929, %v966
      %v969 = vmul.f32 %v930, %v966
      %v970 = vmul.f32 %v931, %v966
      %v971 = vmul.f32 %v932, %v966
      %v972 = vmul.f32 %v933, %v966
      %v973 = vmul.f32 %v934, %v966
      %v974 = vmul.f32 %v935, %v966
      %v975 = vmul.f32 %v936, %v966
      %v976 = vmul.f32 %v937, %v966
      %v977 = vmul.f32 %v938, %v966
      %v978 = vmul.f32 %v939, %v966
      %v979 = vmul.f32 %v940, %v966
      %v980 = vmul.f32 %v941, %v966
      %v981 = vmul.f32 %v942, %v966
      %v982 = vmul.f32 %v943, %v966
      %v983 = vmul.f32 %v944, %v966
      %v984 = vmul.f32 %v945, %v966
      %v985 = vmul.f32 %v946, %v966
      %v986 = vmul.f32 %v947, %v966
      %v987 = vmul.f32 %v948, %v966
      %v988 = vmul.f32 %v949, %v966
      %v989 = vmul.f32 %v950, %v966
      %v990 = vmul.f32 %v951, %v966
      %v991 = vmul.f32 %v952, %v966
      %v992 = vmul.f32 %v953, %v966
      %v993 = vmul.f32 %v954, %v966
      %v994 = vmul.f32 %v955, %v966
      %v995 = vmul.f32 %v956, %v966
      %v996 = vmul.f32 %v957, %v966
      %v997 = vmul.f32 %v958, %v966
      %v998 = vmul.f32 %v959, %v966
      %v999 = vmul.f32 %v960, %v966
      %v1000 = vld [vmem:[%s4] sm:$0x1]
      %v1002 = vlaneseq
      %v1003 = vshrl.u32 %v1002, 7
      %v1004 = vsub.s32 0, %v1003
      %v1005 = vrot.slane %v1000, %v1004
      %v1007 = vadd.f32 %v968, %v1005
      %v1008 = vadd.f32 %v969, %v1005
      %v1009 = vadd.f32 %v970, %v1005
      %v1010 = vadd.f32 %v971, %v1005
      %v1011 = vadd.f32 %v972, %v1005
      %v1012 = vadd.f32 %v973, %v1005
      %v1013 = vadd.f32 %v974, %v1005
      %v1014 = vadd.f32 %v975, %v1005
      %v1015 = vadd.f32 %v976, %v1005
      %v1016 = vadd.f32 %v977, %v1005
      %v1017 = vadd.f32 %v978, %v1005
      %v1018 = vadd.f32 %v979, %v1005
      %v1019 = vadd.f32 %v980, %v1005
      %v1020 = vadd.f32 %v981, %v1005
      %v1021 = vadd.f32 %v982, %v1005
      %v1022 = vadd.f32 %v983, %v1005
      %v1023 = vadd.f32 %v984, %v1005
      %v1024 = vadd.f32 %v985, %v1005
      %v1025 = vadd.f32 %v986, %v1005
      %v1026 = vadd.f32 %v987, %v1005
      %v1027 = vadd.f32 %v988, %v1005
      %v1028 = vadd.f32 %v989, %v1005
      %v1029 = vadd.f32 %v990, %v1005
      %v1030 = vadd.f32 %v991, %v1005
      %v1031 = vadd.f32 %v992, %v1005
      %v1032 = vadd.f32 %v993, %v1005
      %v1033 = vadd.f32 %v994, %v1005
      %v1034 = vadd.f32 %v995, %v1005
      %v1035 = vadd.f32 %v996, %v1005
      %v1036 = vadd.f32 %v997, %v1005
      %v1037 = vadd.f32 %v998, %v1005
      %v1038 = vadd.f32 %v999, %v1005
      %v1039 = vmul.f32 %v1007, 0.70710677
      %v1040 = vmul.f32 %v1008, 0.70710677
      %v1041 = vmul.f32 %v1009, 0.70710677
      %v1042 = vmul.f32 %v1010, 0.70710677
      %v1043 = vmul.f32 %v1011, 0.70710677
      %v1044 = vmul.f32 %v1012, 0.70710677
      %v1045 = vmul.f32 %v1013, 0.70710677
      %v1046 = vmul.f32 %v1014, 0.70710677
      %v1047 = vmul.f32 %v1015, 0.70710677
      %v1048 = vmul.f32 %v1016, 0.70710677
      %v1049 = vmul.f32 %v1017, 0.70710677
      %v1050 = vmul.f32 %v1018, 0.70710677
      %v1051 = vmul.f32 %v1019, 0.70710677
      %v1052 = vmul.f32 %v1020, 0.70710677
      %v1053 = vmul.f32 %v1021, 0.70710677
      %v1054 = vmul.f32 %v1022, 0.70710677
      %v1055 = vmul.f32 %v1023, 0.70710677
      %v1056 = vmul.f32 %v1024, 0.70710677
      %v1057 = vmul.f32 %v1025, 0.70710677
      %v1058 = vmul.f32 %v1026, 0.70710677
      %v1059 = vmul.f32 %v1027, 0.70710677
      %v1060 = vmul.f32 %v1028, 0.70710677
      %v1061 = vmul.f32 %v1029, 0.70710677
      %v1062 = vmul.f32 %v1030, 0.70710677
      %v1063 = vmul.f32 %v1031, 0.70710677
      %v1064 = vmul.f32 %v1032, 0.70710677
      %v1065 = vmul.f32 %v1033, 0.70710677
      %v1066 = vmul.f32 %v1034, 0.70710677
      %v1067 = vmul.f32 %v1035, 0.70710677
      %v1068 = vmul.f32 %v1036, 0.70710677
      %v1069 = vmul.f32 %v1037, 0.70710677
      %v1070 = vmul.f32 %v1038, 0.70710677
      %vm1071 = vcmp.ge.f32.partialorder %v1039, 0.0
      %vm1072 = vcmp.ge.f32.partialorder %v1040, 0.0
      %vm1073 = vcmp.ge.f32.partialorder %v1041, 0.0
      %vm1074 = vcmp.ge.f32.partialorder %v1042, 0.0
      %vm1075 = vcmp.ge.f32.partialorder %v1043, 0.0
      %vm1076 = vcmp.ge.f32.partialorder %v1044, 0.0
      %vm1077 = vcmp.ge.f32.partialorder %v1045, 0.0
      %vm1078 = vcmp.ge.f32.partialorder %v1046, 0.0
      %vm1079 = vcmp.ge.f32.partialorder %v1047, 0.0
      %vm1080 = vcmp.ge.f32.partialorder %v1048, 0.0
      %vm1081 = vcmp.ge.f32.partialorder %v1049, 0.0
      %vm1082 = vcmp.ge.f32.partialorder %v1050, 0.0
      %vm1083 = vcmp.ge.f32.partialorder %v1051, 0.0
      %vm1084 = vcmp.ge.f32.partialorder %v1052, 0.0
      %vm1085 = vcmp.ge.f32.partialorder %v1053, 0.0
      %vm1086 = vcmp.ge.f32.partialorder %v1054, 0.0
      %vm1087 = vcmp.ge.f32.partialorder %v1055, 0.0
      %vm1088 = vcmp.ge.f32.partialorder %v1056, 0.0
      %vm1089 = vcmp.ge.f32.partialorder %v1057, 0.0
      %vm1090 = vcmp.ge.f32.partialorder %v1058, 0.0
      %vm1091 = vcmp.ge.f32.partialorder %v1059, 0.0
      %vm1092 = vcmp.ge.f32.partialorder %v1060, 0.0
      %vm1093 = vcmp.ge.f32.partialorder %v1061, 0.0
      %vm1094 = vcmp.ge.f32.partialorder %v1062, 0.0
      %vm1095 = vcmp.ge.f32.partialorder %v1063, 0.0
      %vm1096 = vcmp.ge.f32.partialorder %v1064, 0.0
      %vm1097 = vcmp.ge.f32.partialorder %v1065, 0.0
      %vm1098 = vcmp.ge.f32.partialorder %v1066, 0.0
      %vm1099 = vcmp.ge.f32.partialorder %v1067, 0.0
      %vm1100 = vcmp.ge.f32.partialorder %v1068, 0.0
      %vm1101 = vcmp.ge.f32.partialorder %v1069, 0.0
      %vm1102 = vcmp.ge.f32.partialorder %v1070, 0.0
      %v1103 = vsel %vm1071, 1.0, -1.0
      %v1104 = vsel %vm1072, 1.0, -1.0
      %v1105 = vsel %vm1073, 1.0, -1.0
      %v1106 = vsel %vm1074, 1.0, -1.0
      %v1107 = vsel %vm1075, 1.0, -1.0
      %v1108 = vsel %vm1076, 1.0, -1.0
      %v1109 = vsel %vm1077, 1.0, -1.0
      %v1110 = vsel %vm1078, 1.0, -1.0
      %v1111 = vsel %vm1079, 1.0, -1.0
      %v1112 = vsel %vm1080, 1.0, -1.0
      %v1113 = vsel %vm1081, 1.0, -1.0
      %v1114 = vsel %vm1082, 1.0, -1.0
      %v1115 = vsel %vm1083, 1.0, -1.0
      %v1116 = vsel %vm1084, 1.0, -1.0
      %v1117 = vsel %vm1085, 1.0, -1.0
      %v1118 = vsel %vm1086, 1.0, -1.0
      %v1119 = vsel %vm1087, 1.0, -1.0
      %v1120 = vsel %vm1088, 1.0, -1.0
      %v1121 = vsel %vm1089, 1.0, -1.0
      %v1122 = vsel %vm1090, 1.0, -1.0
      %v1123 = vsel %vm1091, 1.0, -1.0
      %v1124 = vsel %vm1092, 1.0, -1.0
      %v1125 = vsel %vm1093, 1.0, -1.0
      %v1126 = vsel %vm1094, 1.0, -1.0
      %v1127 = vsel %vm1095, 1.0, -1.0
      %v1128 = vsel %vm1096, 1.0, -1.0
      %v1129 = vsel %vm1097, 1.0, -1.0
      %v1130 = vsel %vm1098, 1.0, -1.0
      %v1131 = vsel %vm1099, 1.0, -1.0
      %v1132 = vsel %vm1100, 1.0, -1.0
      %v1133 = vsel %vm1101, 1.0, -1.0
      %v1134 = vsel %vm1102, 1.0, -1.0
      %v1135 = vand.u32 2147483647, %v1039
      %v1136 = vand.u32 2147483647, %v1040
      %v1137 = vand.u32 2147483647, %v1041
      %v1138 = vand.u32 2147483647, %v1042
      %v1139 = vand.u32 2147483647, %v1043
      %v1140 = vand.u32 2147483647, %v1044
      %v1141 = vand.u32 2147483647, %v1045
      %v1142 = vand.u32 2147483647, %v1046
      %v1143 = vand.u32 2147483647, %v1047
      %v1144 = vand.u32 2147483647, %v1048
      %v1145 = vand.u32 2147483647, %v1049
      %v1146 = vand.u32 2147483647, %v1050
      %v1147 = vand.u32 2147483647, %v1051
      %v1148 = vand.u32 2147483647, %v1052
      %v1149 = vand.u32 2147483647, %v1053
      %v1150 = vand.u32 2147483647, %v1054
      %v1151 = vand.u32 2147483647, %v1055
      %v1152 = vand.u32 2147483647, %v1056
      %v1153 = vand.u32 2147483647, %v1057
      %v1154 = vand.u32 2147483647, %v1058
      %v1155 = vand.u32 2147483647, %v1059
      %v1156 = vand.u32 2147483647, %v1060
      %v1157 = vand.u32 2147483647, %v1061
      %v1158 = vand.u32 2147483647, %v1062
      %v1159 = vand.u32 2147483647, %v1063
      %v1160 = vand.u32 2147483647, %v1064
      %v1161 = vand.u32 2147483647, %v1065
      %v1162 = vand.u32 2147483647, %v1066
      %v1163 = vand.u32 2147483647, %v1067
      %v1164 = vand.u32 2147483647, %v1068
      %v1165 = vand.u32 2147483647, %v1069
      %v1166 = vand.u32 2147483647, %v1070
      %v1167 = vmul.f32 %v1135, 0.3275911
      %v1168 = vmul.f32 %v1136, 0.3275911
      %v1169 = vmul.f32 %v1137, 0.3275911
      %v1170 = vmul.f32 %v1138, 0.3275911
      %v1171 = vmul.f32 %v1139, 0.3275911
      %v1172 = vmul.f32 %v1140, 0.3275911
      %v1173 = vmul.f32 %v1141, 0.3275911
      %v1174 = vmul.f32 %v1142, 0.3275911
      %v1175 = vmul.f32 %v1143, 0.3275911
      %v1176 = vmul.f32 %v1144, 0.3275911
      %v1177 = vmul.f32 %v1145, 0.3275911
      %v1178 = vmul.f32 %v1146, 0.3275911
      %v1179 = vmul.f32 %v1147, 0.3275911
      %v1180 = vmul.f32 %v1148, 0.3275911
      %v1181 = vmul.f32 %v1149, 0.3275911
      %v1182 = vmul.f32 %v1150, 0.3275911
      %v1183 = vmul.f32 %v1151, 0.3275911
      %v1184 = vmul.f32 %v1152, 0.3275911
      %v1185 = vmul.f32 %v1153, 0.3275911
      %v1186 = vmul.f32 %v1154, 0.3275911
      %v1187 = vmul.f32 %v1155, 0.3275911
      %v1188 = vmul.f32 %v1156, 0.3275911
      %v1189 = vmul.f32 %v1157, 0.3275911
      %v1190 = vmul.f32 %v1158, 0.3275911
      %v1191 = vmul.f32 %v1159, 0.3275911
      %v1192 = vmul.f32 %v1160, 0.3275911
      %v1193 = vmul.f32 %v1161, 0.3275911
      %v1194 = vmul.f32 %v1162, 0.3275911
      %v1195 = vmul.f32 %v1163, 0.3275911
      %v1196 = vmul.f32 %v1164, 0.3275911
      %v1197 = vmul.f32 %v1165, 0.3275911
      %v1198 = vmul.f32 %v1166, 0.3275911
      %v1199 = vadd.f32 %v1167, 1.0
      %v1200 = vadd.f32 %v1168, 1.0
      %v1201 = vadd.f32 %v1169, 1.0
      %v1202 = vadd.f32 %v1170, 1.0
      %v1203 = vadd.f32 %v1171, 1.0
      %v1204 = vadd.f32 %v1172, 1.0
      %v1205 = vadd.f32 %v1173, 1.0
      %v1206 = vadd.f32 %v1174, 1.0
      %v1207 = vadd.f32 %v1175, 1.0
      %v1208 = vadd.f32 %v1176, 1.0
      %v1209 = vadd.f32 %v1177, 1.0
      %v1210 = vadd.f32 %v1178, 1.0
      %v1211 = vadd.f32 %v1179, 1.0
      %v1212 = vadd.f32 %v1180, 1.0
      %v1213 = vadd.f32 %v1181, 1.0
      %v1214 = vadd.f32 %v1182, 1.0
      %v1215 = vadd.f32 %v1183, 1.0
      %v1216 = vadd.f32 %v1184, 1.0
      %v1217 = vadd.f32 %v1185, 1.0
      %v1218 = vadd.f32 %v1186, 1.0
      %v1219 = vadd.f32 %v1187, 1.0
      %v1220 = vadd.f32 %v1188, 1.0
      %v1221 = vadd.f32 %v1189, 1.0
      %v1222 = vadd.f32 %v1190, 1.0
      %v1223 = vadd.f32 %v1191, 1.0
      %v1224 = vadd.f32 %v1192, 1.0
      %v1225 = vadd.f32 %v1193, 1.0
      %v1226 = vadd.f32 %v1194, 1.0
      %v1227 = vadd.f32 %v1195, 1.0
      %v1228 = vadd.f32 %v1196, 1.0
      %v1229 = vadd.f32 %v1197, 1.0
      %v1230 = vadd.f32 %v1198, 1.0
      %v1231 = vrcp.pop %v1199
      %v1232 = vrcp.pop %v1200
      %v1233 = vrcp.pop %v1201
      %v1234 = vrcp.pop %v1202
      %v1235 = vrcp.pop %v1203
      %v1236 = vrcp.pop %v1204
      %v1237 = vrcp.pop %v1205
      %v1238 = vrcp.pop %v1206
      %v1239 = vrcp.pop %v1207
      %v1240 = vrcp.pop %v1208
      %v1241 = vrcp.pop %v1209
      %v1242 = vrcp.pop %v1210
      %v1243 = vrcp.pop %v1211
      %v1244 = vrcp.pop %v1212
      %v1245 = vrcp.pop %v1213
      %v1246 = vrcp.pop %v1214
      %v1247 = vrcp.pop %v1215
      %v1248 = vrcp.pop %v1216
      %v1249 = vrcp.pop %v1217
      %v1250 = vrcp.pop %v1218
      %v1251 = vrcp.pop %v1219
      %v1252 = vrcp.pop %v1220
      %v1253 = vrcp.pop %v1221
      %v1254 = vrcp.pop %v1222
      %v1255 = vrcp.pop %v1223
      %v1256 = vrcp.pop %v1224
      %v1257 = vrcp.pop %v1225
      %v1258 = vrcp.pop %v1226
      %v1259 = vrcp.pop %v1227
      %v1260 = vrcp.pop %v1228
      %v1261 = vrcp.pop %v1229
      %v1262 = vrcp.pop %v1230
      %v1263 = vmul.f32 %v1231, 1.0614054
      %v1264 = vmul.f32 %v1232, 1.0614054
      %v1265 = vmul.f32 %v1233, 1.0614054
      %v1266 = vmul.f32 %v1234, 1.0614054
      %v1267 = vmul.f32 %v1235, 1.0614054
      %v1268 = vmul.f32 %v1236, 1.0614054
      %v1269 = vmul.f32 %v1237, 1.0614054
      %v1270 = vmul.f32 %v1238, 1.0614054
      %v1271 = vmul.f32 %v1239, 1.0614054
      %v1272 = vmul.f32 %v1240, 1.0614054
      %v1273 = vmul.f32 %v1241, 1.0614054
      %v1274 = vmul.f32 %v1242, 1.0614054
      %v1275 = vmul.f32 %v1243, 1.0614054
      %v1276 = vmul.f32 %v1244, 1.0614054
      %v1277 = vmul.f32 %v1245, 1.0614054
      %v1278 = vmul.f32 %v1246, 1.0614054
      %v1279 = vmul.f32 %v1247, 1.0614054
      %v1280 = vmul.f32 %v1248, 1.0614054
      %v1281 = vmul.f32 %v1249, 1.0614054
      %v1282 = vmul.f32 %v1250, 1.0614054
      %v1283 = vmul.f32 %v1251, 1.0614054
      %v1284 = vmul.f32 %v1252, 1.0614054
      %v1285 = vmul.f32 %v1253, 1.0614054
      %v1286 = vmul.f32 %v1254, 1.0614054
      %v1287 = vmul.f32 %v1255, 1.0614054
      %v1288 = vmul.f32 %v1256, 1.0614054
      %v1289 = vmul.f32 %v1257, 1.0614054
      %v1290 = vmul.f32 %v1258, 1.0614054
      %v1291 = vmul.f32 %v1259, 1.0614054
      %v1292 = vmul.f32 %v1260, 1.0614054
      %v1293 = vmul.f32 %v1261, 1.0614054
      %v1294 = vmul.f32 %v1262, 1.0614054
      %v1295 = vsub.f32 %v1263, 1.4531521
      %v1296 = vsub.f32 %v1264, 1.4531521
      %v1297 = vsub.f32 %v1265, 1.4531521
      %v1298 = vsub.f32 %v1266, 1.4531521
      %v1299 = vsub.f32 %v1267, 1.4531521
      %v1300 = vsub.f32 %v1268, 1.4531521
      %v1301 = vsub.f32 %v1269, 1.4531521
      %v1302 = vsub.f32 %v1270, 1.4531521
      %v1303 = vsub.f32 %v1271, 1.4531521
      %v1304 = vsub.f32 %v1272, 1.4531521
      %v1305 = vsub.f32 %v1273, 1.4531521
      %v1306 = vsub.f32 %v1274, 1.4531521
      %v1307 = vsub.f32 %v1275, 1.4531521
      %v1308 = vsub.f32 %v1276, 1.4531521
      %v1309 = vsub.f32 %v1277, 1.4531521
      %v1310 = vsub.f32 %v1278, 1.4531521
      %v1311 = vsub.f32 %v1279, 1.4531521
      %v1312 = vsub.f32 %v1280, 1.4531521
      %v1313 = vsub.f32 %v1281, 1.4531521
      %v1314 = vsub.f32 %v1282, 1.4531521
      %v1315 = vsub.f32 %v1283, 1.4531521
      %v1316 = vsub.f32 %v1284, 1.4531521
      %v1317 = vsub.f32 %v1285, 1.4531521
      %v1318 = vsub.f32 %v1286, 1.4531521
      %v1319 = vsub.f32 %v1287, 1.4531521
      %v1320 = vsub.f32 %v1288, 1.4531521
      %v1321 = vsub.f32 %v1289, 1.4531521
      %v1322 = vsub.f32 %v1290, 1.4531521
      %v1323 = vsub.f32 %v1291, 1.4531521
      %v1324 = vsub.f32 %v1292, 1.4531521
      %v1325 = vsub.f32 %v1293, 1.4531521
      %v1326 = vsub.f32 %v1294, 1.4531521
      %v1327 = vmul.f32 %v1295, %v1231
      %v1328 = vmul.f32 %v1296, %v1232
      %v1329 = vmul.f32 %v1297, %v1233
      %v1330 = vmul.f32 %v1298, %v1234
      %v1331 = vmul.f32 %v1299, %v1235
      %v1332 = vmul.f32 %v1300, %v1236
      %v1333 = vmul.f32 %v1301, %v1237
      %v1334 = vmul.f32 %v1302, %v1238
      %v1335 = vmul.f32 %v1303, %v1239
      %v1336 = vmul.f32 %v1304, %v1240
      %v1337 = vmul.f32 %v1305, %v1241
      %v1338 = vmul.f32 %v1306, %v1242
      %v1339 = vmul.f32 %v1307, %v1243
      %v1340 = vmul.f32 %v1308, %v1244
      %v1341 = vmul.f32 %v1309, %v1245
      %v1342 = vmul.f32 %v1310, %v1246
      %v1343 = vmul.f32 %v1311, %v1247
      %v1344 = vmul.f32 %v1312, %v1248
      %v1345 = vmul.f32 %v1313, %v1249
      %v1346 = vmul.f32 %v1314, %v1250
      %v1347 = vmul.f32 %v1315, %v1251
      %v1348 = vmul.f32 %v1316, %v1252
      %v1349 = vmul.f32 %v1317, %v1253
      %v1350 = vmul.f32 %v1318, %v1254
      %v1351 = vmul.f32 %v1319, %v1255
      %v1352 = vmul.f32 %v1320, %v1256
      %v1353 = vmul.f32 %v1321, %v1257
      %v1354 = vmul.f32 %v1322, %v1258
      %v1355 = vmul.f32 %v1323, %v1259
      %v1356 = vmul.f32 %v1324, %v1260
      %v1357 = vmul.f32 %v1325, %v1261
      %v1358 = vmul.f32 %v1326, %v1262
      %v1359 = vadd.f32 %v1327, 1.4214138
      %v1360 = vadd.f32 %v1328, 1.4214138
      %v1361 = vadd.f32 %v1329, 1.4214138
      %v1362 = vadd.f32 %v1330, 1.4214138
      %v1363 = vadd.f32 %v1331, 1.4214138
      %v1364 = vadd.f32 %v1332, 1.4214138
      %v1365 = vadd.f32 %v1333, 1.4214138
      %v1366 = vadd.f32 %v1334, 1.4214138
      %v1367 = vadd.f32 %v1335, 1.4214138
      %v1368 = vadd.f32 %v1336, 1.4214138
      %v1369 = vadd.f32 %v1337, 1.4214138
      %v1370 = vadd.f32 %v1338, 1.4214138
      %v1371 = vadd.f32 %v1339, 1.4214138
      %v1372 = vadd.f32 %v1340, 1.4214138
      %v1373 = vadd.f32 %v1341, 1.4214138
      %v1374 = vadd.f32 %v1342, 1.4214138
      %v1375 = vadd.f32 %v1343, 1.4214138
      %v1376 = vadd.f32 %v1344, 1.4214138
      %v1377 = vadd.f32 %v1345, 1.4214138
      %v1378 = vadd.f32 %v1346, 1.4214138
      %v1379 = vadd.f32 %v1347, 1.4214138
      %v1380 = vadd.f32 %v1348, 1.4214138
      %v1381 = vadd.f32 %v1349, 1.4214138
      %v1382 = vadd.f32 %v1350, 1.4214138
      %v1383 = vadd.f32 %v1351, 1.4214138
      %v1384 = vadd.f32 %v1352, 1.4214138
      %v1385 = vadd.f32 %v1353, 1.4214138
      %v1386 = vadd.f32 %v1354, 1.4214138
      %v1387 = vadd.f32 %v1355, 1.4214138
      %v1388 = vadd.f32 %v1356, 1.4214138
      %v1389 = vadd.f32 %v1357, 1.4214138
      %v1390 = vadd.f32 %v1358, 1.4214138
      %v1391 = vmul.f32 %v1359, %v1231
      %v1392 = vmul.f32 %v1360, %v1232
      %v1393 = vmul.f32 %v1361, %v1233
      %v1394 = vmul.f32 %v1362, %v1234
      %v1395 = vmul.f32 %v1363, %v1235
      %v1396 = vmul.f32 %v1364, %v1236
      %v1397 = vmul.f32 %v1365, %v1237
      %v1398 = vmul.f32 %v1366, %v1238
      %v1399 = vmul.f32 %v1367, %v1239
      %v1400 = vmul.f32 %v1368, %v1240
      %v1401 = vmul.f32 %v1369, %v1241
      %v1402 = vmul.f32 %v1370, %v1242
      %v1403 = vmul.f32 %v1371, %v1243
      %v1404 = vmul.f32 %v1372, %v1244
      %v1405 = vmul.f32 %v1373, %v1245
      %v1406 = vmul.f32 %v1374, %v1246
      %v1407 = vmul.f32 %v1375, %v1247
      %v1408 = vmul.f32 %v1376, %v1248
      %v1409 = vmul.f32 %v1377, %v1249
      %v1410 = vmul.f32 %v1378, %v1250
      %v1411 = vmul.f32 %v1379, %v1251
      %v1412 = vmul.f32 %v1380, %v1252
      %v1413 = vmul.f32 %v1381, %v1253
      %v1414 = vmul.f32 %v1382, %v1254
      %v1415 = vmul.f32 %v1383, %v1255
      %v1416 = vmul.f32 %v1384, %v1256
      %v1417 = vmul.f32 %v1385, %v1257
      %v1418 = vmul.f32 %v1386, %v1258
      %v1419 = vmul.f32 %v1387, %v1259
      %v1420 = vmul.f32 %v1388, %v1260
      %v1421 = vmul.f32 %v1389, %v1261
      %v1422 = vmul.f32 %v1390, %v1262
      %v1423 = vsub.f32 %v1391, 0.28449672
      %v1424 = vsub.f32 %v1392, 0.28449672
      %v1425 = vsub.f32 %v1393, 0.28449672
      %v1426 = vsub.f32 %v1394, 0.28449672
      %v1427 = vsub.f32 %v1395, 0.28449672
      %v1428 = vsub.f32 %v1396, 0.28449672
      %v1429 = vsub.f32 %v1397, 0.28449672
      %v1430 = vsub.f32 %v1398, 0.28449672
      %v1431 = vsub.f32 %v1399, 0.28449672
      %v1432 = vsub.f32 %v1400, 0.28449672
      %v1433 = vsub.f32 %v1401, 0.28449672
      %v1434 = vsub.f32 %v1402, 0.28449672
      %v1435 = vsub.f32 %v1403, 0.28449672
      %v1436 = vsub.f32 %v1404, 0.28449672
      %v1437 = vsub.f32 %v1405, 0.28449672
      %v1438 = vsub.f32 %v1406, 0.28449672
      %v1439 = vsub.f32 %v1407, 0.28449672
      %v1440 = vsub.f32 %v1408, 0.28449672
      %v1441 = vsub.f32 %v1409, 0.28449672
      %v1442 = vsub.f32 %v1410, 0.28449672
      %v1443 = vsub.f32 %v1411, 0.28449672
      %v1444 = vsub.f32 %v1412, 0.28449672
      %v1445 = vsub.f32 %v1413, 0.28449672
      %v1446 = vsub.f32 %v1414, 0.28449672
      %v1447 = vsub.f32 %v1415, 0.28449672
      %v1448 = vsub.f32 %v1416, 0.28449672
      %v1449 = vsub.f32 %v1417, 0.28449672
      %v1450 = vsub.f32 %v1418, 0.28449672
      %v1451 = vsub.f32 %v1419, 0.28449672
      %v1452 = vsub.f32 %v1420, 0.28449672
      %v1453 = vsub.f32 %v1421, 0.28449672
      %v1454 = vsub.f32 %v1422, 0.28449672
      %v1455 = vmul.f32 %v1423, %v1231
      %v1456 = vmul.f32 %v1424, %v1232
      %v1457 = vmul.f32 %v1425, %v1233
      %v1458 = vmul.f32 %v1426, %v1234
      %v1459 = vmul.f32 %v1427, %v1235
      %v1460 = vmul.f32 %v1428, %v1236
      %v1461 = vmul.f32 %v1429, %v1237
      %v1462 = vmul.f32 %v1430, %v1238
      %v1463 = vmul.f32 %v1431, %v1239
      %v1464 = vmul.f32 %v1432, %v1240
      %v1465 = vmul.f32 %v1433, %v1241
      %v1466 = vmul.f32 %v1434, %v1242
      %v1467 = vmul.f32 %v1435, %v1243
      %v1468 = vmul.f32 %v1436, %v1244
      %v1469 = vmul.f32 %v1437, %v1245
      %v1470 = vmul.f32 %v1438, %v1246
      %v1471 = vmul.f32 %v1439, %v1247
      %v1472 = vmul.f32 %v1440, %v1248
      %v1473 = vmul.f32 %v1441, %v1249
      %v1474 = vmul.f32 %v1442, %v1250
      %v1475 = vmul.f32 %v1443, %v1251
      %v1476 = vmul.f32 %v1444, %v1252
      %v1477 = vmul.f32 %v1445, %v1253
      %v1478 = vmul.f32 %v1446, %v1254
      %v1479 = vmul.f32 %v1447, %v1255
      %v1480 = vmul.f32 %v1448, %v1256
      %v1481 = vmul.f32 %v1449, %v1257
      %v1482 = vmul.f32 %v1450, %v1258
      %v1483 = vmul.f32 %v1451, %v1259
      %v1484 = vmul.f32 %v1452, %v1260
      %v1485 = vmul.f32 %v1453, %v1261
      %v1486 = vmul.f32 %v1454, %v1262
      %v1487 = vadd.f32 %v1455, 0.2548296
      %v1488 = vadd.f32 %v1456, 0.2548296
      %v1489 = vadd.f32 %v1457, 0.2548296
      %v1490 = vadd.f32 %v1458, 0.2548296
      %v1491 = vadd.f32 %v1459, 0.2548296
      %v1492 = vadd.f32 %v1460, 0.2548296
      %v1493 = vadd.f32 %v1461, 0.2548296
      %v1494 = vadd.f32 %v1462, 0.2548296
      %v1495 = vadd.f32 %v1463, 0.2548296
      %v1496 = vadd.f32 %v1464, 0.2548296
      %v1497 = vadd.f32 %v1465, 0.2548296
      %v1498 = vadd.f32 %v1466, 0.2548296
      %v1499 = vadd.f32 %v1467, 0.2548296
      %v1500 = vadd.f32 %v1468, 0.2548296
      %v1501 = vadd.f32 %v1469, 0.2548296
      %v1502 = vadd.f32 %v1470, 0.2548296
      %v1503 = vadd.f32 %v1471, 0.2548296
      %v1504 = vadd.f32 %v1472, 0.2548296
      %v1505 = vadd.f32 %v1473, 0.2548296
      %v1506 = vadd.f32 %v1474, 0.2548296
      %v1507 = vadd.f32 %v1475, 0.2548296
      %v1508 = vadd.f32 %v1476, 0.2548296
      %v1509 = vadd.f32 %v1477, 0.2548296
      %v1510 = vadd.f32 %v1478, 0.2548296
      %v1511 = vadd.f32 %v1479, 0.2548296
      %v1512 = vadd.f32 %v1480, 0.2548296
      %v1513 = vadd.f32 %v1481, 0.2548296
      %v1514 = vadd.f32 %v1482, 0.2548296
      %v1515 = vadd.f32 %v1483, 0.2548296
      %v1516 = vadd.f32 %v1484, 0.2548296
      %v1517 = vadd.f32 %v1485, 0.2548296
      %v1518 = vadd.f32 %v1486, 0.2548296
      %v1519 = vmul.f32 %v1487, %v1231
      %v1520 = vmul.f32 %v1488, %v1232
      %v1521 = vmul.f32 %v1489, %v1233
      %v1522 = vmul.f32 %v1490, %v1234
      %v1523 = vmul.f32 %v1491, %v1235
      %v1524 = vmul.f32 %v1492, %v1236
      %v1525 = vmul.f32 %v1493, %v1237
      %v1526 = vmul.f32 %v1494, %v1238
      %v1527 = vmul.f32 %v1495, %v1239
      %v1528 = vmul.f32 %v1496, %v1240
      %v1529 = vmul.f32 %v1497, %v1241
      %v1530 = vmul.f32 %v1498, %v1242
      %v1531 = vmul.f32 %v1499, %v1243
      %v1532 = vmul.f32 %v1500, %v1244
      %v1533 = vmul.f32 %v1501, %v1245
      %v1534 = vmul.f32 %v1502, %v1246
      %v1535 = vmul.f32 %v1503, %v1247
      %v1536 = vmul.f32 %v1504, %v1248
      %v1537 = vmul.f32 %v1505, %v1249
      %v1538 = vmul.f32 %v1506, %v1250
      %v1539 = vmul.f32 %v1507, %v1251
      %v1540 = vmul.f32 %v1508, %v1252
      %v1541 = vmul.f32 %v1509, %v1253
      %v1542 = vmul.f32 %v1510, %v1254
      %v1543 = vmul.f32 %v1511, %v1255
      %v1544 = vmul.f32 %v1512, %v1256
      %v1545 = vmul.f32 %v1513, %v1257
      %v1546 = vmul.f32 %v1514, %v1258
      %v1547 = vmul.f32 %v1515, %v1259
      %v1548 = vmul.f32 %v1516, %v1260
      %v1549 = vmul.f32 %v1517, %v1261
      %v1550 = vmul.f32 %v1518, %v1262
      %v1551 = vsub.f32 0.0, %v1135
      %v1552 = vsub.f32 0.0, %v1136
      %v1553 = vsub.f32 0.0, %v1137
      %v1554 = vsub.f32 0.0, %v1138
      %v1555 = vsub.f32 0.0, %v1139
      %v1556 = vsub.f32 0.0, %v1140
      %v1557 = vsub.f32 0.0, %v1141
      %v1558 = vsub.f32 0.0, %v1142
      %v1559 = vsub.f32 0.0, %v1143
      %v1560 = vsub.f32 0.0, %v1144
      %v1561 = vsub.f32 0.0, %v1145
      %v1562 = vsub.f32 0.0, %v1146
      %v1563 = vsub.f32 0.0, %v1147
      %v1564 = vsub.f32 0.0, %v1148
      %v1565 = vsub.f32 0.0, %v1149
      %v1566 = vsub.f32 0.0, %v1150
      %v1567 = vsub.f32 0.0, %v1151
      %v1568 = vsub.f32 0.0, %v1152
      %v1569 = vsub.f32 0.0, %v1153
      %v1570 = vsub.f32 0.0, %v1154
      %v1571 = vsub.f32 0.0, %v1155
      %v1572 = vsub.f32 0.0, %v1156
      %v1573 = vsub.f32 0.0, %v1157
      %v1574 = vsub.f32 0.0, %v1158
      %v1575 = vsub.f32 0.0, %v1159
      %v1576 = vsub.f32 0.0, %v1160
      %v1577 = vsub.f32 0.0, %v1161
      %v1578 = vsub.f32 0.0, %v1162
      %v1579 = vsub.f32 0.0, %v1163
      %v1580 = vsub.f32 0.0, %v1164
      %v1581 = vsub.f32 0.0, %v1165
      %v1582 = vsub.f32 0.0, %v1166
      %v1583 = vmul.f32 %v1551, %v1135
      %v1584 = vmul.f32 %v1552, %v1136
      %v1585 = vmul.f32 %v1553, %v1137
      %v1586 = vmul.f32 %v1554, %v1138
      %v1587 = vmul.f32 %v1555, %v1139
      %v1588 = vmul.f32 %v1556, %v1140
      %v1589 = vmul.f32 %v1557, %v1141
      %v1590 = vmul.f32 %v1558, %v1142
      %v1591 = vmul.f32 %v1559, %v1143
      %v1592 = vmul.f32 %v1560, %v1144
      %v1593 = vmul.f32 %v1561, %v1145
      %v1594 = vmul.f32 %v1562, %v1146
      %v1595 = vmul.f32 %v1563, %v1147
      %v1596 = vmul.f32 %v1564, %v1148
      %v1597 = vmul.f32 %v1565, %v1149
      %v1598 = vmul.f32 %v1566, %v1150
      %v1599 = vmul.f32 %v1567, %v1151
      %v1600 = vmul.f32 %v1568, %v1152
      %v1601 = vmul.f32 %v1569, %v1153
      %v1602 = vmul.f32 %v1570, %v1154
      %v1603 = vmul.f32 %v1571, %v1155
      %v1604 = vmul.f32 %v1572, %v1156
      %v1605 = vmul.f32 %v1573, %v1157
      %v1606 = vmul.f32 %v1574, %v1158
      %v1607 = vmul.f32 %v1575, %v1159
      %v1608 = vmul.f32 %v1576, %v1160
      %v1609 = vmul.f32 %v1577, %v1161
      %v1610 = vmul.f32 %v1578, %v1162
      %v1611 = vmul.f32 %v1579, %v1163
      %v1612 = vmul.f32 %v1580, %v1164
      %v1613 = vmul.f32 %v1581, %v1165
      %v1614 = vmul.f32 %v1582, %v1166
      %v1615 = vmul.f32 %v1583, 1.442695
      %v1616 = vpow.pop %v1615
      %v1617 = vmul.f32 %v1584, 1.442695
      %v1618 = vpow.pop %v1617
      %v1619 = vmul.f32 %v1585, 1.442695
      %v1620 = vpow.pop %v1619
      %v1621 = vmul.f32 %v1586, 1.442695
      %v1622 = vpow.pop %v1621
      %v1623 = vmul.f32 %v1587, 1.442695
      %v1624 = vpow.pop %v1623
      %v1625 = vmul.f32 %v1588, 1.442695
      %v1626 = vpow.pop %v1625
      %v1627 = vmul.f32 %v1589, 1.442695
      %v1628 = vpow.pop %v1627
      %v1629 = vmul.f32 %v1590, 1.442695
      %v1630 = vpow.pop %v1629
      %v1631 = vmul.f32 %v1591, 1.442695
      %v1632 = vpow.pop %v1631
      %v1633 = vmul.f32 %v1592, 1.442695
      %v1634 = vpow.pop %v1633
      %v1635 = vmul.f32 %v1593, 1.442695
      %v1636 = vpow.pop %v1635
      %v1637 = vmul.f32 %v1594, 1.442695
      %v1638 = vpow.pop %v1637
      %v1639 = vmul.f32 %v1595, 1.442695
      %v1640 = vpow.pop %v1639
      %v1641 = vmul.f32 %v1596, 1.442695
      %v1642 = vpow.pop %v1641
      %v1643 = vmul.f32 %v1597, 1.442695
      %v1644 = vpow.pop %v1643
      %v1645 = vmul.f32 %v1598, 1.442695
      %v1646 = vpow.pop %v1645
      %v1647 = vmul.f32 %v1599, 1.442695
      %v1648 = vpow.pop %v1647
      %v1649 = vmul.f32 %v1600, 1.442695
      %v1650 = vpow.pop %v1649
      %v1651 = vmul.f32 %v1601, 1.442695
      %v1652 = vpow.pop %v1651
      %v1653 = vmul.f32 %v1602, 1.442695
      %v1654 = vpow.pop %v1653
      %v1655 = vmul.f32 %v1603, 1.442695
      %v1656 = vpow.pop %v1655
      %v1657 = vmul.f32 %v1604, 1.442695
      %v1658 = vpow.pop %v1657
      %v1659 = vmul.f32 %v1605, 1.442695
      %v1660 = vpow.pop %v1659
      %v1661 = vmul.f32 %v1606, 1.442695
      %v1662 = vpow.pop %v1661
      %v1663 = vmul.f32 %v1607, 1.442695
      %v1664 = vpow.pop %v1663
      %v1665 = vmul.f32 %v1608, 1.442695
      %v1666 = vpow.pop %v1665
      %v1667 = vmul.f32 %v1609, 1.442695
      %v1668 = vpow.pop %v1667
      %v1669 = vmul.f32 %v1610, 1.442695
      %v1670 = vpow.pop %v1669
      %v1671 = vmul.f32 %v1611, 1.442695
      %v1672 = vpow.pop %v1671
      %v1673 = vmul.f32 %v1612, 1.442695
      %v1674 = vpow.pop %v1673
      %v1675 = vmul.f32 %v1613, 1.442695
      %v1676 = vpow.pop %v1675
      %v1677 = vmul.f32 %v1614, 1.442695
      %v1678 = vpow.pop %v1677
      %v1679 = vmul.f32 %v1519, %v1616
      %v1680 = vmul.f32 %v1520, %v1618
      %v1681 = vmul.f32 %v1521, %v1620
      %v1682 = vmul.f32 %v1522, %v1622
      %v1683 = vmul.f32 %v1523, %v1624
      %v1684 = vmul.f32 %v1524, %v1626
      %v1685 = vmul.f32 %v1525, %v1628
      %v1686 = vmul.f32 %v1526, %v1630
      %v1687 = vmul.f32 %v1527, %v1632
      %v1688 = vmul.f32 %v1528, %v1634
      %v1689 = vmul.f32 %v1529, %v1636
      %v1690 = vmul.f32 %v1530, %v1638
      %v1691 = vmul.f32 %v1531, %v1640
      %v1692 = vmul.f32 %v1532, %v1642
      %v1693 = vmul.f32 %v1533, %v1644
      %v1694 = vmul.f32 %v1534, %v1646
      %v1695 = vmul.f32 %v1535, %v1648
      %v1696 = vmul.f32 %v1536, %v1650
      %v1697 = vmul.f32 %v1537, %v1652
      %v1698 = vmul.f32 %v1538, %v1654
      %v1699 = vmul.f32 %v1539, %v1656
      %v1700 = vmul.f32 %v1540, %v1658
      %v1701 = vmul.f32 %v1541, %v1660
      %v1702 = vmul.f32 %v1542, %v1662
      %v1703 = vmul.f32 %v1543, %v1664
      %v1704 = vmul.f32 %v1544, %v1666
      %v1705 = vmul.f32 %v1545, %v1668
      %v1706 = vmul.f32 %v1546, %v1670
      %v1707 = vmul.f32 %v1547, %v1672
      %v1708 = vmul.f32 %v1548, %v1674
      %v1709 = vmul.f32 %v1549, %v1676
      %v1710 = vmul.f32 %v1550, %v1678
      %v1711 = vsub.f32 1.0, %v1679
      %v1712 = vsub.f32 1.0, %v1680
      %v1713 = vsub.f32 1.0, %v1681
      %v1714 = vsub.f32 1.0, %v1682
      %v1715 = vsub.f32 1.0, %v1683
      %v1716 = vsub.f32 1.0, %v1684
      %v1717 = vsub.f32 1.0, %v1685
      %v1718 = vsub.f32 1.0, %v1686
      %v1719 = vsub.f32 1.0, %v1687
      %v1720 = vsub.f32 1.0, %v1688
      %v1721 = vsub.f32 1.0, %v1689
      %v1722 = vsub.f32 1.0, %v1690
      %v1723 = vsub.f32 1.0, %v1691
      %v1724 = vsub.f32 1.0, %v1692
      %v1725 = vsub.f32 1.0, %v1693
      %v1726 = vsub.f32 1.0, %v1694
      %v1727 = vsub.f32 1.0, %v1695
      %v1728 = vsub.f32 1.0, %v1696
      %v1729 = vsub.f32 1.0, %v1697
      %v1730 = vsub.f32 1.0, %v1698
      %v1731 = vsub.f32 1.0, %v1699
      %v1732 = vsub.f32 1.0, %v1700
      %v1733 = vsub.f32 1.0, %v1701
      %v1734 = vsub.f32 1.0, %v1702
      %v1735 = vsub.f32 1.0, %v1703
      %v1736 = vsub.f32 1.0, %v1704
      %v1737 = vsub.f32 1.0, %v1705
      %v1738 = vsub.f32 1.0, %v1706
      %v1739 = vsub.f32 1.0, %v1707
      %v1740 = vsub.f32 1.0, %v1708
      %v1741 = vsub.f32 1.0, %v1709
      %v1742 = vsub.f32 1.0, %v1710
      %v1743 = vmul.f32 %v1103, %v1711
      %v1744 = vmul.f32 %v1104, %v1712
      %v1745 = vmul.f32 %v1105, %v1713
      %v1746 = vmul.f32 %v1106, %v1714
      %v1747 = vmul.f32 %v1107, %v1715
      %v1748 = vmul.f32 %v1108, %v1716
      %v1749 = vmul.f32 %v1109, %v1717
      %v1750 = vmul.f32 %v1110, %v1718
      %v1751 = vmul.f32 %v1111, %v1719
      %v1752 = vmul.f32 %v1112, %v1720
      %v1753 = vmul.f32 %v1113, %v1721
      %v1754 = vmul.f32 %v1114, %v1722
      %v1755 = vmul.f32 %v1115, %v1723
      %v1756 = vmul.f32 %v1116, %v1724
      %v1757 = vmul.f32 %v1117, %v1725
      %v1758 = vmul.f32 %v1118, %v1726
      %v1759 = vmul.f32 %v1119, %v1727
      %v1760 = vmul.f32 %v1120, %v1728
      %v1761 = vmul.f32 %v1121, %v1729
      %v1762 = vmul.f32 %v1122, %v1730
      %v1763 = vmul.f32 %v1123, %v1731
      %v1764 = vmul.f32 %v1124, %v1732
      %v1765 = vmul.f32 %v1125, %v1733
      %v1766 = vmul.f32 %v1126, %v1734
      %v1767 = vmul.f32 %v1127, %v1735
      %v1768 = vmul.f32 %v1128, %v1736
      %v1769 = vmul.f32 %v1129, %v1737
      %v1770 = vmul.f32 %v1130, %v1738
      %v1771 = vmul.f32 %v1131, %v1739
      %v1772 = vmul.f32 %v1132, %v1740
      %v1773 = vmul.f32 %v1133, %v1741
      %v1774 = vmul.f32 %v1134, %v1742
      %v1775 = vmul.f32 %v1007, 0.5
      %v1776 = vmul.f32 %v1008, 0.5
      %v1777 = vmul.f32 %v1009, 0.5
      %v1778 = vmul.f32 %v1010, 0.5
      %v1779 = vmul.f32 %v1011, 0.5
      %v1780 = vmul.f32 %v1012, 0.5
      %v1781 = vmul.f32 %v1013, 0.5
      %v1782 = vmul.f32 %v1014, 0.5
      %v1783 = vmul.f32 %v1015, 0.5
      %v1784 = vmul.f32 %v1016, 0.5
      %v1785 = vmul.f32 %v1017, 0.5
      %v1786 = vmul.f32 %v1018, 0.5
      %v1787 = vmul.f32 %v1019, 0.5
      %v1788 = vmul.f32 %v1020, 0.5
      %v1789 = vmul.f32 %v1021, 0.5
      %v1790 = vmul.f32 %v1022, 0.5
      %v1791 = vmul.f32 %v1023, 0.5
      %v1792 = vmul.f32 %v1024, 0.5
      %v1793 = vmul.f32 %v1025, 0.5
      %v1794 = vmul.f32 %v1026, 0.5
      %v1795 = vmul.f32 %v1027, 0.5
      %v1796 = vmul.f32 %v1028, 0.5
      %v1797 = vmul.f32 %v1029, 0.5
      %v1798 = vmul.f32 %v1030, 0.5
      %v1799 = vmul.f32 %v1031, 0.5
      %v1800 = vmul.f32 %v1032, 0.5
      %v1801 = vmul.f32 %v1033, 0.5
      %v1802 = vmul.f32 %v1034, 0.5
      %v1803 = vmul.f32 %v1035, 0.5
      %v1804 = vmul.f32 %v1036, 0.5
      %v1805 = vmul.f32 %v1037, 0.5
      %v1806 = vmul.f32 %v1038, 0.5
      %v1807 = vadd.f32 %v1743, 1.0
      %v1808 = vadd.f32 %v1744, 1.0
      %v1809 = vadd.f32 %v1745, 1.0
      %v1810 = vadd.f32 %v1746, 1.0
      %v1811 = vadd.f32 %v1747, 1.0
      %v1812 = vadd.f32 %v1748, 1.0
      %v1813 = vadd.f32 %v1749, 1.0
      %v1814 = vadd.f32 %v1750, 1.0
      %v1815 = vadd.f32 %v1751, 1.0
      %v1816 = vadd.f32 %v1752, 1.0
      %v1817 = vadd.f32 %v1753, 1.0
      %v1818 = vadd.f32 %v1754, 1.0
      %v1819 = vadd.f32 %v1755, 1.0
      %v1820 = vadd.f32 %v1756, 1.0
      %v1821 = vadd.f32 %v1757, 1.0
      %v1822 = vadd.f32 %v1758, 1.0
      %v1823 = vadd.f32 %v1759, 1.0
      %v1824 = vadd.f32 %v1760, 1.0
      %v1825 = vadd.f32 %v1761, 1.0
      %v1826 = vadd.f32 %v1762, 1.0
      %v1827 = vadd.f32 %v1763, 1.0
      %v1828 = vadd.f32 %v1764, 1.0
      %v1829 = vadd.f32 %v1765, 1.0
      %v1830 = vadd.f32 %v1766, 1.0
      %v1831 = vadd.f32 %v1767, 1.0
      %v1832 = vadd.f32 %v1768, 1.0
      %v1833 = vadd.f32 %v1769, 1.0
      %v1834 = vadd.f32 %v1770, 1.0
      %v1835 = vadd.f32 %v1771, 1.0
      %v1836 = vadd.f32 %v1772, 1.0
      %v1837 = vadd.f32 %v1773, 1.0
      %v1838 = vadd.f32 %v1774, 1.0
      %v1839 = vmul.f32 %v1775, %v1807
      %v1840 = vmul.f32 %v1776, %v1808
      %v1841 = vmul.f32 %v1777, %v1809
      %v1842 = vmul.f32 %v1778, %v1810
      %v1843 = vmul.f32 %v1779, %v1811
      %v1844 = vmul.f32 %v1780, %v1812
      %v1845 = vmul.f32 %v1781, %v1813
      %v1846 = vmul.f32 %v1782, %v1814
      %v1847 = vmul.f32 %v1783, %v1815
      %v1848 = vmul.f32 %v1784, %v1816
      %v1849 = vmul.f32 %v1785, %v1817
      %v1850 = vmul.f32 %v1786, %v1818
      %v1851 = vmul.f32 %v1787, %v1819
      %v1852 = vmul.f32 %v1788, %v1820
      %v1853 = vmul.f32 %v1789, %v1821
      %v1854 = vmul.f32 %v1790, %v1822
      %v1855 = vmul.f32 %v1791, %v1823
      %v1856 = vmul.f32 %v1792, %v1824
      %v1857 = vmul.f32 %v1793, %v1825
      %v1858 = vmul.f32 %v1794, %v1826
      %v1859 = vmul.f32 %v1795, %v1827
      %v1860 = vmul.f32 %v1796, %v1828
      %v1861 = vmul.f32 %v1797, %v1829
      %v1862 = vmul.f32 %v1798, %v1830
      %v1863 = vmul.f32 %v1799, %v1831
      %v1864 = vmul.f32 %v1800, %v1832
      %v1865 = vmul.f32 %v1801, %v1833
      %v1866 = vmul.f32 %v1802, %v1834
      %v1867 = vmul.f32 %v1803, %v1835
      %v1868 = vmul.f32 %v1804, %v1836
      %v1869 = vmul.f32 %v1805, %v1837
      %v1870 = vmul.f32 %v1806, %v1838
      %v1871 = vpack.c.bf16 %v1840, %v1839
      %v1872 = vpack.c.bf16 %v1842, %v1841
      %v1873 = vpack.c.bf16 %v1844, %v1843
      %v1874 = vpack.c.bf16 %v1846, %v1845
      %v1875 = vpack.c.bf16 %v1848, %v1847
      %v1876 = vpack.c.bf16 %v1850, %v1849
      %v1877 = vpack.c.bf16 %v1852, %v1851
      %v1878 = vpack.c.bf16 %v1854, %v1853
      %v1879 = vpack.c.bf16 %v1856, %v1855
      %v1880 = vpack.c.bf16 %v1858, %v1857
      %v1881 = vpack.c.bf16 %v1860, %v1859
      %v1882 = vpack.c.bf16 %v1862, %v1861
      %v1883 = vpack.c.bf16 %v1864, %v1863
      %v1884 = vpack.c.bf16 %v1866, %v1865
      %v1885 = vpack.c.bf16 %v1868, %v1867
      %v1886 = vpack.c.bf16 %v1870, %v1869
      %v1903 = vunpack.c.l.b16 %v1871
      %v1904 = vunpack.c.h.b16 %v1871
      %v1905 = vunpack.c.l.b16 %v1872
      %v1906 = vunpack.c.h.b16 %v1872
      %v1907 = vunpack.c.l.b16 %v1873
      %v1908 = vunpack.c.h.b16 %v1873
      %v1909 = vunpack.c.l.b16 %v1874
      %v1910 = vunpack.c.h.b16 %v1874
      %v1911 = vunpack.c.l.b16 %v1875
      %v1912 = vunpack.c.h.b16 %v1875
      %v1913 = vunpack.c.l.b16 %v1876
      %v1914 = vunpack.c.h.b16 %v1876
      %v1915 = vunpack.c.l.b16 %v1877
      %v1916 = vunpack.c.h.b16 %v1877
      %v1917 = vunpack.c.l.b16 %v1878
      %v1918 = vunpack.c.h.b16 %v1878
      %v1919 = vunpack.c.l.b16 %v1879
      %v1920 = vunpack.c.h.b16 %v1879
      %v1921 = vunpack.c.l.b16 %v1880
      %v1922 = vunpack.c.h.b16 %v1880
      %v1923 = vunpack.c.l.b16 %v1881
      %v1924 = vunpack.c.h.b16 %v1881
      %v1925 = vunpack.c.l.b16 %v1882
      %v1926 = vunpack.c.h.b16 %v1882
      %v1927 = vunpack.c.l.b16 %v1883
      %v1928 = vunpack.c.h.b16 %v1883
      %v1929 = vunpack.c.l.b16 %v1884
      %v1930 = vunpack.c.h.b16 %v1884
      %v1931 = vunpack.c.l.b16 %v1885
      %v1932 = vunpack.c.h.b16 %v1885
      %v1933 = vunpack.c.l.b16 %v1886
      %v1934 = vunpack.c.h.b16 %v1886
      %v1935 = vpack.c.b16 %v1903, %v1903
      %v1936 = vpack.c.b16 %v1904, %v1904
      %v1937 = vpack.c.b16 %v1905, %v1905
      %v1938 = vpack.c.b16 %v1906, %v1906
      %v1939 = vpack.c.b16 %v1907, %v1907
      %v1940 = vpack.c.b16 %v1908, %v1908
      %v1941 = vpack.c.b16 %v1909, %v1909
      %v1942 = vpack.c.b16 %v1910, %v1910
      %v1943 = vpack.c.b16 %v1911, %v1911
      %v1944 = vpack.c.b16 %v1912, %v1912
      %v1945 = vpack.c.b16 %v1913, %v1913
      %v1946 = vpack.c.b16 %v1914, %v1914
      %v1947 = vpack.c.b16 %v1915, %v1915
      %v1948 = vpack.c.b16 %v1916, %v1916
      %v1949 = vpack.c.b16 %v1917, %v1917
      %v1950 = vpack.c.b16 %v1918, %v1918
      %v1951 = vpack.c.b16 %v1919, %v1919
      %v1952 = vpack.c.b16 %v1920, %v1920
      %v1953 = vpack.c.b16 %v1921, %v1921
      %v1954 = vpack.c.b16 %v1922, %v1922
      %v1955 = vpack.c.b16 %v1923, %v1923
      %v1956 = vpack.c.b16 %v1924, %v1924
      %v1957 = vpack.c.b16 %v1925, %v1925
      %v1958 = vpack.c.b16 %v1926, %v1926
      %v1959 = vpack.c.b16 %v1927, %v1927
      %v1960 = vpack.c.b16 %v1928, %v1928
      %v1961 = vpack.c.b16 %v1929, %v1929
      %v1962 = vpack.c.b16 %v1930, %v1930
      %v1963 = vpack.c.b16 %v1931, %v1931
      %v1964 = vpack.c.b16 %v1932, %v1932
      %v1965 = vpack.c.b16 %v1933, %v1933
      %v1966 = vpack.c.b16 %v1934, %v1934
      %1999 = vst [vmem:[%s226] sm:$0xf] %v1935
      %2000 = vst [vmem:[%s226 + $0x4] sm:$0xf] %v1936
      %2001 = vst [vmem:[%s226 + $0x8] sm:$0xf] %v1937
      %2002 = vst [vmem:[%s226 + $0xc] sm:$0xf] %v1938
      %2003 = vst [vmem:[%s226 + $0x10] sm:$0xf] %v1939
      %2004 = vst [vmem:[%s226 + $0x14] sm:$0xf] %v1940
      %2005 = vst [vmem:[%s226 + $0x18] sm:$0xf] %v1941
      %2006 = vst [vmem:[%s226 + $0x1c] sm:$0xf] %v1942
      %2007 = vst [vmem:[%s226 + $0x20] sm:$0xf] %v1943
      %2008 = vst [vmem:[%s226 + $0x24] sm:$0xf] %v1944
      %2009 = vst [vmem:[%s226 + $0x28] sm:$0xf] %v1945
      %2010 = vst [vmem:[%s226 + $0x2c] sm:$0xf] %v1946
      %2011 = vst [vmem:[%s226 + $0x30] sm:$0xf] %v1947
      %2012 = vst [vmem:[%s226 + $0x34] sm:$0xf] %v1948
      %2013 = vst [vmem:[%s226 + $0x38] sm:$0xf] %v1949
      %2014 = vst [vmem:[%s226 + $0x3c] sm:$0xf] %v1950
      %2015 = vst [vmem:[%s226 + $0x40] sm:$0xf] %v1951
      %2016 = vst [vmem:[%s226 + $0x44] sm:$0xf] %v1952
      %2017 = vst [vmem:[%s226 + $0x48] sm:$0xf] %v1953
      %2018 = vst [vmem:[%s226 + $0x4c] sm:$0xf] %v1954
      %2019 = vst [vmem:[%s226 + $0x50] sm:$0xf] %v1955
      %2020 = vst [vmem:[%s226 + $0x54] sm:$0xf] %v1956
      %2021 = vst [vmem:[%s226 + $0x58] sm:$0xf] %v1957
      %2022 = vst [vmem:[%s226 + $0x5c] sm:$0xf] %v1958
      %2023 = vst [vmem:[%s226 + $0x60] sm:$0xf] %v1959
      %2024 = vst [vmem:[%s226 + $0x64] sm:$0xf] %v1960
      %2025 = vst [vmem:[%s226 + $0x68] sm:$0xf] %v1961
      %2026 = vst [vmem:[%s226 + $0x6c] sm:$0xf] %v1962
      %2027 = vst [vmem:[%s226 + $0x70] sm:$0xf] %v1963
      %2028 = vst [vmem:[%s226 + $0x74] sm:$0xf] %v1964
      %2029 = vst [vmem:[%s226 + $0x78] sm:$0xf] %v1965
      %2030 = vst [vmem:[%s226 + $0x7c] sm:$0xf] %v1966
      %s2031 = smul.u32 32, %s16
      %p2032 = scmp.lt.s32.totalorder %s2031, 63
      %s2033 = scalar_select %p2032, %s2031, 63
      %s2034 = smul.addr %s2033, 4
      %s2035 = scalar_lea.vmem %s5, %s2034
      // Predicated region
      $region41: #{downsample_v2_forward.2} parent=39 // pred_check
        %p2036 = pneg %p144
      $region42: #{downsample_v2_forward.2} parent=39 // pred_check_branch
        %2038 = sbr.rel (%p2036) target = $region44
      $region43: #{downsample_v2_forward.2} parent=39 // pred_region
        %s2039 = smul.u32 32, %s16
      $region44: #{downsample_v2_forward.2} parent=39 // pred_fallthru
        _
    $region40: #{downsample_v2_forward.2} parent=5 // pred_fallthru
      _
    %p2040 = scmp.le.s32.totalorder 2, %s11
    // Predicated region
    $region45: #{downsample_v2_forward.2} parent=5 // pred_check
      %p2041 = pneg %p2040
    $region46: #{downsample_v2_forward.2} parent=5 // pred_check_branch
      %2043 = sbr.rel (%p2041) target = $region48
    $region47: #{downsample_v2_forward.2} parent=5 // pred_region
      %s2044 = ssub.s32 %s11, 2
      // Predicated region
      $region49: #{downsample_v2_forward.2} parent=47 // pred_check
        %p2045 = pneg %p150
      $region50: #{downsample_v2_forward.2} parent=47 // pred_check_branch
        %2047 = sbr.rel (%p2045) target = $region52
      $region51: #{downsample_v2_forward.2} parent=47 // pred_region
        %s2048 = smul.u32 32, %s17
        %p2049 = scmp.lt.s32.totalorder %s2048, 63
        %s2050 = scalar_select %p2049, %s2048, 63
        %s2051 = smul.addr %s2050, 4
        %s2052 = scalar_lea.vmem %s5, %s2051
      $region52: #{downsample_v2_forward.2} parent=47 // pred_fallthru
        _
    $region48: #{downsample_v2_forward.2} parent=5 // pred_fallthru
      _
  $region6: #{downsample_v2_forward.2} parent=0 // loop_footer
    %s15 = sadd.s32 1, %s11
  $region7: #{downsample_v2_forward.2} parent=0 // loop_footer_branch
    %10 = sbr.rel target = $region3
  $region8: #{downsample_v2_forward.2} parent=0 // loop_exit
    _

// kernel: downsample_v2_forward.3
$region0: #{downsample_v2_forward.3}
  #allocation0 [shape = 'u32[]', space=smem, size = 0x4, offset = 0x4, fixed_abs, tag = 'smem constant byte address 0x4 - core index']
  #allocation1 [shape = 'u32[144,128]{1,0:T(1,128)}', space=vmem, size = 0x12000, scoped, tag = 'internal scratch']
  %s0 = inlined_call_operand.vmem [shape: bf16[128,288], index: 0, kind: input, shape index: {}]
  %s1 = inlined_call_operand.vmem [shape: bf16[288,128], index: 1, kind: input, shape index: {}]
  %s2 = inlined_call_operand.vmem [shape: f32[1,128], index: 2, kind: input, shape index: {}]
  %s3 = inlined_call_operand.vmem [shape: f32[1,128], index: 3, kind: input, shape index: {}]
  %s4 = inlined_call_operand.vmem [shape: f32[1,128], index: 4, kind: input, shape index: {}]
  %s5 = inlined_call_operand.hbm [shape: f32[128,128], index: 5, kind: output, shape index: {}]
  %s6 = sld [smem:[#allocation0]]
  $region30: #{downsample_v2_forward.3} parent=0
    _
  %s8 = ssub.s32 1, %s6
  %s9 = scalar_select 0, %s8, %s6
  $region1: #{downsample_v2_forward.3} parent=0
    #allocation2 [shape = 'u8[65536]{0}', space=vmem, size = 0x10000, scoped, tag = 'output window, operand 0, single buffered']
    #allocation3 [shape = 's32[1]{0}', space=sflag, size = 0x4, scoped, tag = 'scoped memory for downsample_v2_forward.3']
    %10 = vsyncpa [#allocation3], 0
    // Predicated region
    $region2: #{downsample_v2_forward.3} parent=1 // pred_check
      _
    $region3: #{downsample_v2_forward.3} parent=1 // pred_check_branch
      %12 = sbr.rel (0) target = $region5
    $region4: #{downsample_v2_forward.3} parent=1 // pred_region
      _
    $region5: #{downsample_v2_forward.3} parent=1 // pred_fallthru
      _
    // Predicated region
    $region6: #{downsample_v2_forward.3} parent=1 // pred_check
      _
    $region7: #{downsample_v2_forward.3} parent=1 // pred_check_branch
      %14 = sbr.rel (0) target = $region9
    $region8: #{downsample_v2_forward.3} parent=1 // pred_region
      _
    $region9: #{downsample_v2_forward.3} parent=1 // pred_fallthru
      _
    // Predicated region
    $region10: #{downsample_v2_forward.3} parent=1 // pred_check
      _
    $region11: #{downsample_v2_forward.3} parent=1 // pred_check_branch
      %16 = sbr.rel (0) target = $region13
    $region12: #{downsample_v2_forward.3} parent=1 // pred_region
      _
    $region13: #{downsample_v2_forward.3} parent=1 // pred_fallthru
      _
    // Predicated region
    $region14: #{downsample_v2_forward.3} parent=1 // pred_check
      _
    $region15: #{downsample_v2_forward.3} parent=1 // pred_check_branch
      %18 = sbr.rel (0) target = $region17
    $region16: #{downsample_v2_forward.3} parent=1 // pred_region
      _
    $region17: #{downsample_v2_forward.3} parent=1 // pred_fallthru
      _
    // Predicated region
    $region18: #{downsample_v2_forward.3} parent=1 // pred_check
      _
    $region19: #{downsample_v2_forward.3} parent=1 // pred_check_branch
      %20 = sbr.rel (0) target = $region21
    $region20: #{downsample_v2_forward.3} parent=1 // pred_region
      _
    $region21: #{downsample_v2_forward.3} parent=1 // pred_fallthru
      _
    %v22 = vld [vmem:[%s0] sm:$0xff]
    %v23 = vld [vmem:[%s0 + $0x8] sm:$0xf]
    %v24 = vld [vmem:[%s0 + $0xc] sm:$0xff]
    %v25 = vld [vmem:[%s0 + $0x14] sm:$0xf]
    %v26 = vld [vmem:[%s0 + $0x18] sm:$0xff]
    %v27 = vld [vmem:[%s0 + $0x20] sm:$0xf]
    %v28 = vld [vmem:[%s0 + $0x24] sm:$0xff]
    %v29 = vld [vmem:[%s0 + $0x2c] sm:$0xf]
    %v30 = vld [vmem:[%s0 + $0x30] sm:$0xff]
    %v31 = vld [vmem:[%s0 + $0x38] sm:$0xf]
    %v32 = vld [vmem:[%s0 + $0x3c] sm:$0xff]
    %v33 = vld [vmem:[%s0 + $0x44] sm:$0xf]
    %v34 = vld [vmem:[%s0 + $0x48] sm:$0xff]
    %v35 = vld [vmem:[%s0 + $0x50] sm:$0xf]
    %v36 = vld [vmem:[%s0 + $0x54] sm:$0xff]
    %v37 = vld [vmem:[%s0 + $0x5c] sm:$0xf]
    %v38 = vld [vmem:[%s0 + $0x60] sm:$0xff]
    %v39 = vld [vmem:[%s0 + $0x68] sm:$0xf]
    %v40 = vld [vmem:[%s0 + $0x6c] sm:$0xff]
    %v41 = vld [vmem:[%s0 + $0x74] sm:$0xf]
    %v42 = vld [vmem:[%s0 + $0x78] sm:$0xff]
    %v43 = vld [vmem:[%s0 + $0x80] sm:$0xf]
    %v44 = vld [vmem:[%s0 + $0x84] sm:$0xff]
    %v45 = vld [vmem:[%s0 + $0x8c] sm:$0xf]
    %v46 = vld [vmem:[%s0 + $0x90] sm:$0xff]
    %v47 = vld [vmem:[%s0 + $0x98] sm:$0xf]
    %v48 = vld [vmem:[%s0 + $0x9c] sm:$0xff]
    %v49 = vld [vmem:[%s0 + $0xa4] sm:$0xf]
    %v50 = vld [vmem:[%s0 + $0xa8] sm:$0xff]
    %v51 = vld [vmem:[%s0 + $0xb0] sm:$0xf]
    %v52 = vld [vmem:[%s0 + $0xb4] sm:$0xff]
    %v53 = vld [vmem:[%s0 + $0xbc] sm:$0xf]
    %v54 = vld [vmem:[%s1] sm:$0xf]
    %v55 = vld [vmem:[%s1 + $0x4] sm:$0xf]
    %v56 = vld [vmem:[%s1 + $0x8] sm:$0xf]
    %v57 = vld [vmem:[%s1 + $0xc] sm:$0xf]
    %v58 = vld [vmem:[%s1 + $0x10] sm:$0xf]
    %v59 = vld [vmem:[%s1 + $0x14] sm:$0xf]
    %v60 = vld [vmem:[%s1 + $0x18] sm:$0xf]
    %v61 = vld [vmem:[%s1 + $0x1c] sm:$0xf]
    %v62 = vld [vmem:[%s1 + $0x20] sm:$0xf]
    %v63 = vld [vmem:[%s1 + $0x24] sm:$0xf]
    %v64 = vld [vmem:[%s1 + $0x28] sm:$0xf]
    %v65 = vld [vmem:[%s1 + $0x2c] sm:$0xf]
    %v66 = vld [vmem:[%s1 + $0x30] sm:$0xf]
    %v67 = vld [vmem:[%s1 + $0x34] sm:$0xf]
    %v68 = vld [vmem:[%s1 + $0x38] sm:$0xf]
    %v69 = vld [vmem:[%s1 + $0x3c] sm:$0xf]
    %v70 = vld [vmem:[%s1 + $0x40] sm:$0xf]
    %v71 = vld [vmem:[%s1 + $0x44] sm:$0xf]
    %v72 = vld [vmem:[%s1 + $0x48] sm:$0xf]
    %v73 = vld [vmem:[%s1 + $0x4c] sm:$0xf]
    %v74 = vld [vmem:[%s1 + $0x50] sm:$0xf]
    %v75 = vld [vmem:[%s1 + $0x54] sm:$0xf]
    %v76 = vld [vmem:[%s1 + $0x58] sm:$0xf]
    %v77 = vld [vmem:[%s1 + $0x5c] sm:$0xf]
    %v78 = vld [vmem:[%s1 + $0x60] sm:$0xf]
    %v79 = vld [vmem:[%s1 + $0x64] sm:$0xf]
    %v80 = vld [vmem:[%s1 + $0x68] sm:$0xf]
    %v81 = vld [vmem:[%s1 + $0x6c] sm:$0xf]
    %v82 = vld [vmem:[%s1 + $0x70] sm:$0xf]
    %v83 = vld [vmem:[%s1 + $0x74] sm:$0xf]
    %v84 = vld [vmem:[%s1 + $0x78] sm:$0xf]
    %v85 = vld [vmem:[%s1 + $0x7c] sm:$0xf]
    %v86 = vld [vmem:[%s1 + $0x80] sm:$0xf]
    %v87 = vld [vmem:[%s1 + $0x84] sm:$0xf]
    %v88 = vld [vmem:[%s1 + $0x88] sm:$0xf]
    %v89 = vld [vmem:[%s1 + $0x8c] sm:$0xf]
    %v90 = vld [vmem:[%s2] sm:$0x1]
    %v92 = vlaneseq
    %v93 = vshrl.u32 %v92, 7
    %v94 = vsub.s32 0, %v93
    %v95 = vrot.slane %v90, %v94
    %v129 = vunpack.c.l.b16 %v22
    %v130 = vunpack.c.h.b16 %v22
    %v131 = vunpack.c.l.b16 %v23
    %v132 = vunpack.c.l.b16 %v24
    %v133 = vunpack.c.h.b16 %v24
    %v134 = vunpack.c.l.b16 %v25
    %v135 = vunpack.c.l.b16 %v26
    %v136 = vunpack.c.h.b16 %v26
    %v137 = vunpack.c.l.b16 %v27
    %v138 = vunpack.c.l.b16 %v28
    %v139 = vunpack.c.h.b16 %v28
    %v140 = vunpack.c.l.b16 %v29
    %v141 = vunpack.c.l.b16 %v30
    %v142 = vunpack.c.h.b16 %v30
    %v143 = vunpack.c.l.b16 %v31
    %v144 = vunpack.c.l.b16 %v32
    %v145 = vunpack.c.h.b16 %v32
    %v146 = vunpack.c.l.b16 %v33
    %v147 = vunpack.c.l.b16 %v34
    %v148 = vunpack.c.h.b16 %v34
    %v149 = vunpack.c.l.b16 %v35
    %v150 = vunpack.c.l.b16 %v36
    %v151 = vunpack.c.h.b16 %v36
    %v152 = vunpack.c.l.b16 %v37
    %v153 = vunpack.c.l.b16 %v38
    %v154 = vunpack.c.h.b16 %v38
    %v155 = vunpack.c.l.b16 %v39
    %v156 = vunpack.c.l.b16 %v40
    %v157 = vunpack.c.h.b16 %v40
    %v158 = vunpack.c.l.b16 %v41
    %v159 = vunpack.c.l.b16 %v42
    %v160 = vunpack.c.h.b16 %v42
    %v161 = vunpack.c.l.b16 %v43
    %v162 = vunpack.c.l.b16 %v44
    %v163 = vunpack.c.h.b16 %v44
    %v164 = vunpack.c.l.b16 %v45
    %v165 = vunpack.c.l.b16 %v46
    %v166 = vunpack.c.h.b16 %v46
    %v167 = vunpack.c.l.b16 %v47
    %v168 = vunpack.c.l.b16 %v48
    %v169 = vunpack.c.h.b16 %v48
    %v170 = vunpack.c.l.b16 %v49
    %v171 = vunpack.c.l.b16 %v50
    %v172 = vunpack.c.h.b16 %v50
    %v173 = vunpack.c.l.b16 %v51
    %v174 = vunpack.c.l.b16 %v52
    %v175 = vunpack.c.h.b16 %v52
    %v176 = vunpack.c.l.b16 %v53
    %v177 = vpack.c.b16 %v132, %v129
    %v178 = vpack.c.b16 %v133, %v130
    %v179 = vpack.c.b16 %v134, %v131
    %v180 = vpack.c.b16 %v138, %v135
    %v181 = vpack.c.b16 %v139, %v136
    %v182 = vpack.c.b16 %v140, %v137
    %v183 = vpack.c.b16 %v144, %v141
    %v184 = vpack.c.b16 %v145, %v142
    %v185 = vpack.c.b16 %v146, %v143
    %v186 = vpack.c.b16 %v150, %v147
    %v187 = vpack.c.b16 %v151, %v148
    %v188 = vpack.c.b16 %v152, %v149
    %v189 = vpack.c.b16 %v156, %v153
    %v190 = vpack.c.b16 %v157, %v154
    %v191 = vpack.c.b16 %v158, %v155
    %v192 = vpack.c.b16 %v162, %v159
    %v193 = vpack.c.b16 %v163, %v160
    %v194 = vpack.c.b16 %v164, %v161
    %v195 = vpack.c.b16 %v168, %v165
    %v196 = vpack.c.b16 %v169, %v166
    %v197 = vpack.c.b16 %v170, %v167
    %v198 = vpack.c.b16 %v174, %v171
    %v199 = vpack.c.b16 %v175, %v172
    %v200 = vpack.c.b16 %v176, %v173
    %v253 = vunpack.c.l.b16 %v54
    %v254 = vunpack.c.l.b16 %v55
    %v255 = vunpack.c.l.b16 %v56
    %v256 = vunpack.c.l.b16 %v57
    %v257 = vunpack.c.l.b16 %v58
    %v258 = vunpack.c.l.b16 %v59
    %v259 = vunpack.c.l.b16 %v60
    %v260 = vunpack.c.l.b16 %v61
    %v261 = vunpack.c.l.b16 %v62
    %v262 = vunpack.c.l.b16 %v63
    %v263 = vunpack.c.l.b16 %v64
    %v264 = vunpack.c.l.b16 %v65
    %v265 = vunpack.c.l.b16 %v66
    %v266 = vunpack.c.l.b16 %v67
    %v267 = vunpack.c.l.b16 %v68
    %v268 = vunpack.c.l.b16 %v69
    %v269 = vunpack.c.l.b16 %v70
    %v270 = vunpack.c.l.b16 %v71
    %v271 = vunpack.c.l.b16 %v72
    %v272 = vunpack.c.l.b16 %v73
    %v273 = vunpack.c.l.b16 %v74
    %v274 = vunpack.c.l.b16 %v75
    %v275 = vunpack.c.l.b16 %v76
    %v276 = vunpack.c.l.b16 %v77
    %v277 = vunpack.c.l.b16 %v78
    %v278 = vunpack.c.l.b16 %v79
    %v279 = vunpack.c.l.b16 %v80
    %v280 = vunpack.c.l.b16 %v81
    %v281 = vunpack.c.l.b16 %v82
    %v282 = vunpack.c.l.b16 %v83
    %v283 = vunpack.c.l.b16 %v84
    %v284 = vunpack.c.l.b16 %v85
    %v285 = vunpack.c.l.b16 %v86
    %v286 = vunpack.c.l.b16 %v87
    %v287 = vunpack.c.l.b16 %v88
    %v288 = vunpack.c.l.b16 %v89
    %v289 = vpack.c.b16 %v254, %v253
    %v290 = vpack.c.b16 %v256, %v255
    %v291 = vpack.c.b16 %v258, %v257
    %v292 = vpack.c.b16 %v260, %v259
    %v293 = vpack.c.b16 %v262, %v261
    %v294 = vpack.c.b16 %v264, %v263
    %v295 = vpack.c.b16 %v266, %v265
    %v296 = vpack.c.b16 %v268, %v267
    %v297 = vpack.c.b16 %v270, %v269
    %v298 = vpack.c.b16 %v272, %v271
    %v299 = vpack.c.b16 %v274, %v273
    %v300 = vpack.c.b16 %v276, %v275
    %v301 = vpack.c.b16 %v278, %v277
    %v302 = vpack.c.b16 %v280, %v279
    %v303 = vpack.c.b16 %v282, %v281
    %v304 = vpack.c.b16 %v284, %v283
    %v305 = vpack.c.b16 %v286, %v285
    %v306 = vpack.c.b16 %v288, %v287
    %vm325 = vcmask 261120
    %v327 = vsel %vm325, %v179, 0
    %v330 = vsel %vm325, %v182, 0
    %v333 = vsel %vm325, %v185, 0
    %v336 = vsel %vm325, %v188, 0
    %v339 = vsel %vm325, %v191, 0
    %v342 = vsel %vm325, %v194, 0
    %v345 = vsel %vm325, %v197, 0
    %v348 = vsel %vm325, %v200, 0
    %350 = vmatprep.subr.bf16.mxu0 0
    %351 = vmatpush1.bf16.msra.mxu0 %v289
    %352 = vmatprep.subr.bf16.mxu0 0
    %353 = vmatpush1.bf16.msra.mxu0 %v290
    %354 = vmatprep.subr.bf16.mxu0 0
    %355 = vmatpush1.bf16.msra.mxu0 %v291
    %356 = vmatprep.subr.bf16.mxu0 0
    %357 = vmatpush1.bf16.msra.mxu0 %v292
    %358 = vmatprep.subr.bf16.mxu0 0
    %359 = vmatpush1.bf16.msra.mxu0 %v293
    %360 = vmatprep.subr.bf16.mxu0 0
    %361 = vmatpush1.bf16.msra.mxu0 %v294
    %362 = vmatprep.subr.bf16.mxu0 0
    %363 = vmatpush1.bf16.msra.mxu0 %v295
    %364 = vmatprep.subr.bf16.mxu0 0
    %365 = vmatpush1.bf16.msra.mxu0 %v296
    %366 = vmatprep.subr.bf16.mxu0 0
    %367 = vmatpush1.bf16.msra.mxu0 %v297
    %368 = vmatprep.subr.bf16.mxu0 0
    %369 = vmatpush1.bf16.msra.mxu0 %v298
    %370 = vmatprep.subr.bf16.mxu0 0
    %371 = vmatpush1.bf16.msra.mxu0 %v299
    %372 = vmatprep.subr.bf16.mxu0 0
    %373 = vmatpush1.bf16.msra.mxu0 %v300
    %374 = vmatprep.subr.bf16.mxu0 0
    %375 = vmatpush1.bf16.msra.mxu0 %v301
    %376 = vmatprep.subr.bf16.mxu0 0
    %377 = vmatpush1.bf16.msra.mxu0 %v302
    %378 = vmatprep.subr.bf16.mxu0 0
    %379 = vmatpush1.bf16.msra.mxu0 %v303
    %380 = vmatprep.subr.bf16.mxu0 0
    %381 = vmatpush1.bf16.msra.mxu0 %v304
    %382 = vmatprep.mubr.bf16.mxu0 %v178
    %383 = vmatmul.mubr.bf16.gmra.mrb[0].mxu0 %v177
    %v384 = vpop.f32.mrb[0].mxu0
    %v385 = vadd.f32 %v95, %v384
    %v386 = vpop.f32.mrb[0].mxu0
    %v387 = vpop.f32.mrb[0].mxu0
    %v388 = vadd.f32 %v95, %v387
    %v389 = vpop.f32.mrb[0].mxu0
    %390 = vmatprep.mubr.bf16.mxu0 %v181
    %391 = vmatmul.mubr.bf16.gmra.mrb[0].mxu0 %v180
    %v392 = vpop.f32.mrb[0].mxu0
    %v393 = vadd.f32 %v95, %v392
    %v394 = vpop.f32.mrb[0].mxu0
    %v395 = vpop.f32.mrb[0].mxu0
    %v396 = vadd.f32 %v95, %v395
    %v397 = vpop.f32.mrb[0].mxu0
    %398 = vmatprep.mubr.bf16.mxu0 %v184
    %399 = vmatmul.mubr.bf16.gmra.mrb[0].mxu0 %v183
    %v400 = vpop.f32.mrb[0].mxu0
    %v401 = vadd.f32 %v95, %v400
    %v402 = vpop.f32.mrb[0].mxu0
    %v403 = vpop.f32.mrb[0].mxu0
    %v404 = vadd.f32 %v95, %v403
    %v405 = vpop.f32.mrb[0].mxu0
    %406 = vmatprep.mubr.bf16.mxu0 %v187
    %407 = vmatmul.mubr.bf16.gmra.mrb[0].mxu0 %v186
    %v408 = vpop.f32.mrb[0].mxu0
    %v409 = vadd.f32 %v95, %v408
    %v410 = vpop.f32.mrb[0].mxu0
    %v411 = vpop.f32.mrb[0].mxu0
    %v412 = vadd.f32 %v95, %v411
    %v413 = vpop.f32.mrb[0].mxu0
    %414 = vmatprep.mubr.bf16.mxu0 %v190
    %415 = vmatmul.mubr.bf16.gmra.mrb[0].mxu0 %v189
    %v416 = vpop.f32.mrb[0].mxu0
    %v417 = vadd.f32 %v95, %v416
    %v418 = vpop.f32.mrb[0].mxu0
    %v419 = vpop.f32.mrb[0].mxu0
    %v420 = vadd.f32 %v95, %v419
    %v421 = vpop.f32.mrb[0].mxu0
    %422 = vmatprep.mubr.bf16.mxu0 %v193
    %423 = vmatmul.mubr.bf16.gmra.mrb[0].mxu0 %v192
    %v424 = vpop.f32.mrb[0].mxu0
    %v425 = vadd.f32 %v95, %v424
    %v426 = vpop.f32.mrb[0].mxu0
    %v427 = vpop.f32.mrb[0].mxu0
    %v428 = vadd.f32 %v95, %v427
    %v429 = vpop.f32.mrb[0].mxu0
    %430 = vmatprep.mubr.bf16.mxu0 %v196
    %431 = vmatmul.mubr.bf16.gmra.mrb[0].mxu0 %v195
    %v432 = vpop.f32.mrb[0].mxu0
    %v433 = vadd.f32 %v95, %v432
    %v434 = vpop.f32.mrb[0].mxu0
    %v435 = vpop.f32.mrb[0].mxu0
    %v436 = vadd.f32 %v95, %v435
    %v437 = vpop.f32.mrb[0].mxu0
    %438 = vmatprep.mubr.bf16.mxu0 %v199
    %439 = vmatmul.mubr.bf16.gmra.mrb[0].mxu0 %v198
    %v440 = vpop.f32.mrb[0].mxu0
    %v441 = vadd.f32 %v95, %v440
    %v442 = vpop.f32.mrb[0].mxu0
    %v443 = vpop.f32.mrb[0].mxu0
    %v444 = vadd.f32 %v95, %v443
    %v445 = vpop.f32.mrb[0].mxu0
    %446 = vdwg.mxu0
    %447 = vmatprep.subr.bf16.mxu0 0
    %448 = vmatpush1.bf16.msra.mxu0 %v305
    %449 = vmatprep.subr.bf16.mxu0 0
    %450 = vmatpush1.bf16.msra.mxu0 %v306
    %451 = vmatprep.subr.bf16.mxu0 0
    %452 = vmatpush1.bf16.msra.mxu0 0
    %453 = vmatprep.subr.bf16.mxu0 0
    %454 = vmatpush1.bf16.msra.mxu0 0
    %455 = vmatprep.subr.bf16.mxu0 0
    %456 = vmatpush1.bf16.msra.mxu0 0
    %457 = vmatprep.subr.bf16.mxu0 0
    %458 = vmatpush1.bf16.msra.mxu0 0
    %459 = vmatprep.subr.bf16.mxu0 0
    %460 = vmatpush1.bf16.msra.mxu0 0
    %461 = vmatprep.subr.bf16.mxu0 0
    %462 = vmatpush1.bf16.msra.mxu0 0
    %463 = vmatprep.subr.bf16.mxu0 0
    %464 = vmatpush1.bf16.msra.mxu0 0
    %465 = vmatprep.subr.bf16.mxu0 0
    %466 = vmatpush1.bf16.msra.mxu0 0
    %467 = vmatprep.subr.bf16.mxu0 0
    %468 = vmatpush1.bf16.msra.mxu0 0
    %469 = vmatprep.subr.bf16.mxu0 0
    %470 = vmatpush1.bf16.msra.mxu0 0
    %471 = vmatprep.subr.bf16.mxu0 0
    %472 = vmatpush1.bf16.msra.mxu0 0
    %473 = vmatprep.subr.bf16.mxu0 0
    %474 = vmatpush1.bf16.msra.mxu0 0
    %475 = vmatprep.subr.bf16.mxu0 0
    %476 = vmatpush1.bf16.msra.mxu0 0
    %477 = vmatprep.subr.bf16.mxu0 0
    %478 = vmatpush1.bf16.msra.mxu0 0
    %479 = vmatprep.mubr.bf16.mxu0 0
    %480 = vmatmul.mubr.bf16.gmra.mrb[0].mxu0 %v327
    %v481 = vpop.f32.mrb[0].mxu0
    %v482 = vadd.f32 %v385, %v481
    %v483 = vpop.f32.mrb[0].mxu0
    %v484 = vpop.f32.mrb[0].mxu0
    %v485 = vadd.f32 %v388, %v484
    %v486 = vpop.f32.mrb[0].mxu0
    %487 = vmatprep.mubr.bf16.mxu0 0
    %488 = vmatmul.mubr.bf16.gmra.mrb[0].mxu0 %v330
    %v489 = vpop.f32.mrb[0].mxu0
    %v490 = vadd.f32 %v393, %v489
    %v491 = vpop.f32.mrb[0].mxu0
    %v492 = vpop.f32.mrb[0].mxu0
    %v493 = vadd.f32 %v396, %v492
    %v494 = vpop.f32.mrb[0].mxu0
    %495 = vmatprep.mubr.bf16.mxu0 0
    %496 = vmatmul.mubr.bf16.gmra.mrb[0].mxu0 %v333
    %v497 = vpop.f32.mrb[0].mxu0
    %v498 = vadd.f32 %v401, %v497
    %v499 = vpop.f32.mrb[0].mxu0
    %v500 = vpop.f32.mrb[0].mxu0
    %v501 = vadd.f32 %v404, %v500
    %v502 = vpop.f32.mrb[0].mxu0
    %503 = vmatprep.mubr.bf16.mxu0 0
    %504 = vmatmul.mubr.bf16.gmra.mrb[0].mxu0 %v336
    %v505 = vpop.f32.mrb[0].mxu0
    %v506 = vadd.f32 %v409, %v505
    %v507 = vpop.f32.mrb[0].mxu0
    %v508 = vpop.f32.mrb[0].mxu0
    %v509 = vadd.f32 %v412, %v508
    %v510 = vpop.f32.mrb[0].mxu0
    %511 = vmatprep.mubr.bf16.mxu0 0
    %512 = vmatmul.mubr.bf16.gmra.mrb[0].mxu0 %v339
    %v513 = vpop.f32.mrb[0].mxu0
    %v514 = vadd.f32 %v417, %v513
    %v515 = vpop.f32.mrb[0].mxu0
    %v516 = vpop.f32.mrb[0].mxu0
    %v517 = vadd.f32 %v420, %v516
    %v518 = vpop.f32.mrb[0].mxu0
    %519 = vmatprep.mubr.bf16.mxu0 0
    %520 = vmatmul.mubr.bf16.gmra.mrb[0].mxu0 %v342
    %v521 = vpop.f32.mrb[0].mxu0
    %v522 = vadd.f32 %v425, %v521
    %v523 = vpop.f32.mrb[0].mxu0
    %v524 = vpop.f32.mrb[0].mxu0
    %v525 = vadd.f32 %v428, %v524
    %v526 = vpop.f32.mrb[0].mxu0
    %527 = vmatprep.mubr.bf16.mxu0 0
    %528 = vmatmul.mubr.bf16.gmra.mrb[0].mxu0 %v345
    %v529 = vpop.f32.mrb[0].mxu0
    %v530 = vadd.f32 %v433, %v529
    %v531 = vpop.f32.mrb[0].mxu0
    %v532 = vpop.f32.mrb[0].mxu0
    %v533 = vadd.f32 %v436, %v532
    %v534 = vpop.f32.mrb[0].mxu0
    %535 = vmatprep.mubr.bf16.mxu0 0
    %536 = vmatmul.mubr.bf16.gmra.mrb[0].mxu0 %v348
    %v537 = vpop.f32.mrb[0].mxu0
    %v538 = vadd.f32 %v441, %v537
    %v539 = vpop.f32.mrb[0].mxu0
    %v540 = vpop.f32.mrb[0].mxu0
    %v541 = vadd.f32 %v444, %v540
    %v542 = vpop.f32.mrb[0].mxu0
    %543 = vdwg.mxu0
    %v544 = vlaneseq
    %v545 = vand.u32 %v544, 127
    %vm546 = vcmp.lt.s32.totalorder %v545, 64
    %547 = vadd.xlane.f32.xlu0 %v482
    %v548 = vpop.xlane.xlu0 %547
    %549 = vadd.xlane.f32.xlu0 %v485
    %v550 = vpop.xlane.xlu0 %549
    %551 = vadd.xlane.f32.xlu0 %v490
    %v552 = vpop.xlane.xlu0 %551
    %553 = vadd.xlane.f32.xlu0 %v493
    %v554 = vpop.xlane.xlu0 %553
    %555 = vadd.xlane.f32.xlu0 %v498
    %v556 = vpop.xlane.xlu0 %555
    %557 = vadd.xlane.f32.xlu0 %v501
    %v558 = vpop.xlane.xlu0 %557
    %559 = vadd.xlane.f32.xlu0 %v506
    %v560 = vpop.xlane.xlu0 %559
    %561 = vadd.xlane.f32.xlu0 %v509
    %v562 = vpop.xlane.xlu0 %561
    %563 = vadd.xlane.f32.xlu0 %v514
    %v564 = vpop.xlane.xlu0 %563
    %565 = vadd.xlane.f32.xlu0 %v517
    %v566 = vpop.xlane.xlu0 %565
    %567 = vadd.xlane.f32.xlu0 %v522
    %v568 = vpop.xlane.xlu0 %567
    %569 = vadd.xlane.f32.xlu0 %v525
    %v570 = vpop.xlane.xlu0 %569
    %571 = vadd.xlane.f32.xlu0 %v530
    %v572 = vpop.xlane.xlu0 %571
    %573 = vadd.xlane.f32.xlu0 %v533
    %v574 = vpop.xlane.xlu0 %573
    %575 = vadd.xlane.f32.xlu0 %v538
    %v576 = vpop.xlane.xlu0 %575
    %577 = vadd.xlane.f32.xlu0 %v541
    %v578 = vpop.xlane.xlu0 %577
    %v579 = vmul.f32 %v548, 0.015625
    %v580 = vmul.f32 %v550, 0.015625
    %v581 = vmul.f32 %v552, 0.015625
    %v582 = vmul.f32 %v554, 0.015625
    %v583 = vmul.f32 %v556, 0.015625
    %v584 = vmul.f32 %v558, 0.015625
    %v585 = vmul.f32 %v560, 0.015625
    %v586 = vmul.f32 %v562, 0.015625
    %v587 = vmul.f32 %v564, 0.015625
    %v588 = vmul.f32 %v566, 0.015625
    %v589 = vmul.f32 %v568, 0.015625
    %v590 = vmul.f32 %v570, 0.015625
    %v591 = vmul.f32 %v572, 0.015625
    %v592 = vmul.f32 %v574, 0.015625
    %v593 = vmul.f32 %v576, 0.015625
    %v594 = vmul.f32 %v578, 0.015625
    %v595 = vsub.f32 %v482, %v579
    %v596 = vsub.f32 %v485, %v580
    %v597 = vsub.f32 %v490, %v581
    %v598 = vsub.f32 %v493, %v582
    %v599 = vsub.f32 %v498, %v583
    %v600 = vsub.f32 %v501, %v584
    %v601 = vsub.f32 %v506, %v585
    %v602 = vsub.f32 %v509, %v586
    %v603 = vsub.f32 %v514, %v587
    %v604 = vsub.f32 %v517, %v588
    %v605 = vsub.f32 %v522, %v589
    %v606 = vsub.f32 %v525, %v590
    %v607 = vsub.f32 %v530, %v591
    %v608 = vsub.f32 %v533, %v592
    %v609 = vsub.f32 %v538, %v593
    %v610 = vsub.f32 %v541, %v594
    %v611 = vsel %vm546, %v595, 0.0
    %v612 = vsel %vm546, %v596, 0.0
    %v613 = vsel %vm546, %v597, 0.0
    %v614 = vsel %vm546, %v598, 0.0
    %v615 = vsel %vm546, %v599, 0.0
    %v616 = vsel %vm546, %v600, 0.0
    %v617 = vsel %vm546, %v601, 0.0
    %v618 = vsel %vm546, %v602, 0.0
    %v619 = vsel %vm546, %v603, 0.0
    %v620 = vsel %vm546, %v604, 0.0
    %v621 = vsel %vm546, %v605, 0.0
    %v622 = vsel %vm546, %v606, 0.0
    %v623 = vsel %vm546, %v607, 0.0
    %v624 = vsel %vm546, %v608, 0.0
    %v625 = vsel %vm546, %v609, 0.0
    %v626 = vsel %vm546, %v610, 0.0
    %v627 = vmul.f32 %v611, %v611
    %v628 = vmul.f32 %v612, %v612
    %v629 = vmul.f32 %v613, %v613
    %v630 = vmul.f32 %v614, %v614
    %v631 = vmul.f32 %v615, %v615
    %v632 = vmul.f32 %v616, %v616
    %v633 = vmul.f32 %v617, %v617
    %v634 = vmul.f32 %v618, %v618
    %v635 = vmul.f32 %v619, %v619
    %v636 = vmul.f32 %v620, %v620
    %v637 = vmul.f32 %v621, %v621
    %v638 = vmul.f32 %v622, %v622
    %v639 = vmul.f32 %v623, %v623
    %v640 = vmul.f32 %v624, %v624
    %v641 = vmul.f32 %v625, %v625
    %v642 = vmul.f32 %v626, %v626
    %643 = vadd.xlane.f32.xlu0 %v627
    %v644 = vpop.xlane.xlu0 %643
    %645 = vadd.xlane.f32.xlu0 %v628
    %v646 = vpop.xlane.xlu0 %645
    %647 = vadd.xlane.f32.xlu0 %v629
    %v648 = vpop.xlane.xlu0 %647
    %649 = vadd.xlane.f32.xlu0 %v630
    %v650 = vpop.xlane.xlu0 %649
    %651 = vadd.xlane.f32.xlu0 %v631
    %v652 = vpop.xlane.xlu0 %651
    %653 = vadd.xlane.f32.xlu0 %v632
    %v654 = vpop.xlane.xlu0 %653
    %655 = vadd.xlane.f32.xlu0 %v633
    %v656 = vpop.xlane.xlu0 %655
    %657 = vadd.xlane.f32.xlu0 %v634
    %v658 = vpop.xlane.xlu0 %657
    %659 = vadd.xlane.f32.xlu0 %v635
    %v660 = vpop.xlane.xlu0 %659
    %661 = vadd.xlane.f32.xlu0 %v636
    %v662 = vpop.xlane.xlu0 %661
    %663 = vadd.xlane.f32.xlu0 %v637
    %v664 = vpop.xlane.xlu0 %663
    %665 = vadd.xlane.f32.xlu0 %v638
    %v666 = vpop.xlane.xlu0 %665
    %667 = vadd.xlane.f32.xlu0 %v639
    %v668 = vpop.xlane.xlu0 %667
    %669 = vadd.xlane.f32.xlu0 %v640
    %v670 = vpop.xlane.xlu0 %669
    %671 = vadd.xlane.f32.xlu0 %v641
    %v672 = vpop.xlane.xlu0 %671
    %673 = vadd.xlane.f32.xlu0 %v642
    %v674 = vpop.xlane.xlu0 %673
    %v675 = vmul.f32 %v644, 0.015625
    %v676 = vmul.f32 %v646, 0.015625
    %v677 = vmul.f32 %v648, 0.015625
    %v678 = vmul.f32 %v650, 0.015625
    %v679 = vmul.f32 %v652, 0.015625
    %v680 = vmul.f32 %v654, 0.015625
    %v681 = vmul.f32 %v656, 0.015625
    %v682 = vmul.f32 %v658, 0.015625
    %v683 = vmul.f32 %v660, 0.015625
    %v684 = vmul.f32 %v662, 0.015625
    %v685 = vmul.f32 %v664, 0.015625
    %v686 = vmul.f32 %v666, 0.015625
    %v687 = vmul.f32 %v668, 0.015625
    %v688 = vmul.f32 %v670, 0.015625
    %v689 = vmul.f32 %v672, 0.015625
    %v690 = vmul.f32 %v674, 0.015625
    %v691 = vadd.f32 %v675, 1e-06
    %v692 = vadd.f32 %v676, 1e-06
    %v693 = vadd.f32 %v677, 1e-06
    %v694 = vadd.f32 %v678, 1e-06
    %v695 = vadd.f32 %v679, 1e-06
    %v696 = vadd.f32 %v680, 1e-06
    %v697 = vadd.f32 %v681, 1e-06
    %v698 = vadd.f32 %v682, 1e-06
    %v699 = vadd.f32 %v683, 1e-06
    %v700 = vadd.f32 %v684, 1e-06
    %v701 = vadd.f32 %v685, 1e-06
    %v702 = vadd.f32 %v686, 1e-06
    %v703 = vadd.f32 %v687, 1e-06
    %v704 = vadd.f32 %v688, 1e-06
    %v705 = vadd.f32 %v689, 1e-06
    %v706 = vadd.f32 %v690, 1e-06
    %v707 = vrsqrt.pop %v691
    %v708 = vrsqrt.pop %v692
    %v709 = vrsqrt.pop %v693
    %v710 = vrsqrt.pop %v694
    %v711 = vrsqrt.pop %v695
    %v712 = vrsqrt.pop %v696
    %v713 = vrsqrt.pop %v697
    %v714 = vrsqrt.pop %v698
    %v715 = vrsqrt.pop %v699
    %v716 = vrsqrt.pop %v700
    %v717 = vrsqrt.pop %v701
    %v718 = vrsqrt.pop %v702
    %v719 = vrsqrt.pop %v703
    %v720 = vrsqrt.pop %v704
    %v721 = vrsqrt.pop %v705
    %v722 = vrsqrt.pop %v706
    %v723 = vmul.f32 %v611, %v707
    %v724 = vmul.f32 %v612, %v708
    %v725 = vmul.f32 %v613, %v709
    %v726 = vmul.f32 %v614, %v710
    %v727 = vmul.f32 %v615, %v711
    %v728 = vmul.f32 %v616, %v712
    %v729 = vmul.f32 %v617, %v713
    %v730 = vmul.f32 %v618, %v714
    %v731 = vmul.f32 %v619, %v715
    %v732 = vmul.f32 %v620, %v716
    %v733 = vmul.f32 %v621, %v717
    %v734 = vmul.f32 %v622, %v718
    %v735 = vmul.f32 %v623, %v719
    %v736 = vmul.f32 %v624, %v720
    %v737 = vmul.f32 %v625, %v721
    %v738 = vmul.f32 %v626, %v722
    %v739 = vld [vmem:[%s3] sm:$0x1]
    %v741 = vlaneseq
    %v742 = vshrl.u32 %v741, 7
    %v743 = vsub.s32 0, %v742
    %v744 = vrot.slane %v739, %v743
    %v746 = vmul.f32 %v723, %v744
    %v747 = vmul.f32 %v724, %v744
    %v748 = vmul.f32 %v725, %v744
    %v749 = vmul.f32 %v726, %v744
    %v750 = vmul.f32 %v727, %v744
    %v751 = vmul.f32 %v728, %v744
    %v752 = vmul.f32 %v729, %v744
    %v753 = vmul.f32 %v730, %v744
    %v754 = vmul.f32 %v731, %v744
    %v755 = vmul.f32 %v732, %v744
    %v756 = vmul.f32 %v733, %v744
    %v757 = vmul.f32 %v734, %v744
    %v758 = vmul.f32 %v735, %v744
    %v759 = vmul.f32 %v736, %v744
    %v760 = vmul.f32 %v737, %v744
    %v761 = vmul.f32 %v738, %v744
    %v762 = vld [vmem:[%s4] sm:$0x1]
    %v764 = vlaneseq
    %v765 = vshrl.u32 %v764, 7
    %v766 = vsub.s32 0, %v765
    %v767 = vrot.slane %v762, %v766
    %v769 = vadd.f32 %v746, %v767
    %v770 = vadd.f32 %v747, %v767
    %v771 = vadd.f32 %v748, %v767
    %v772 = vadd.f32 %v749, %v767
    %v773 = vadd.f32 %v750, %v767
    %v774 = vadd.f32 %v751, %v767
    %v775 = vadd.f32 %v752, %v767
    %v776 = vadd.f32 %v753, %v767
    %v777 = vadd.f32 %v754, %v767
    %v778 = vadd.f32 %v755, %v767
    %v779 = vadd.f32 %v756, %v767
    %v780 = vadd.f32 %v757, %v767
    %v781 = vadd.f32 %v758, %v767
    %v782 = vadd.f32 %v759, %v767
    %v783 = vadd.f32 %v760, %v767
    %v784 = vadd.f32 %v761, %v767
    %785 = vst [vmem:[#allocation2] sm:$0xff] %v769
    %786 = vst [vmem:[#allocation2 + $0x8] sm:$0xff] %v770
    %787 = vst [vmem:[#allocation2 + $0x10] sm:$0xff] %v771
    %788 = vst [vmem:[#allocation2 + $0x18] sm:$0xff] %v772
    %789 = vst [vmem:[#allocation2 + $0x20] sm:$0xff] %v773
    %790 = vst [vmem:[#allocation2 + $0x28] sm:$0xff] %v774
    %791 = vst [vmem:[#allocation2 + $0x30] sm:$0xff] %v775
    %792 = vst [vmem:[#allocation2 + $0x38] sm:$0xff] %v776
    %793 = vst [vmem:[#allocation2 + $0x40] sm:$0xff] %v777
    %794 = vst [vmem:[#allocation2 + $0x48] sm:$0xff] %v778
    %795 = vst [vmem:[#allocation2 + $0x50] sm:$0xff] %v779
    %796 = vst [vmem:[#allocation2 + $0x58] sm:$0xff] %v780
    %797 = vst [vmem:[#allocation2 + $0x60] sm:$0xff] %v781
    %798 = vst [vmem:[#allocation2 + $0x68] sm:$0xff] %v782
    %799 = vst [vmem:[#allocation2 + $0x70] sm:$0xff] %v783
    %800 = vst [vmem:[#allocation2 + $0x78] sm:$0xff] %v784
    // Predicated region
    $region22: #{downsample_v2_forward.3} parent=1 // pred_check
      _
    $region23: #{downsample_v2_forward.3} parent=1 // pred_check_branch
      %802 = sbr.rel (0) target = $region25
    $region24: #{downsample_v2_forward.3} parent=1 // pred_region
      %s804 = ssub.s32 2048, 2048
      %805 = vsyncadd [#allocation3], %s804
      %s806 = sshll.u32 [#allocation2], 4
      %s807 = int_to_ptr.vmem [resolvable:$true] %s806
      %812 = dma.vmem_to_hbm [thread:$0]  %s807, 2048, %s5, [#allocation3], 128, 128, 8
    $region25: #{downsample_v2_forward.3} parent=1 // pred_fallthru
      _
    // Predicated region
    $region26: #{downsample_v2_forward.3} parent=1 // pred_check
      _
    $region27: #{downsample_v2_forward.3} parent=1 // pred_check_branch
      %814 = sbr.rel (0) target = $region29
    $region28: #{downsample_v2_forward.3} parent=1 // pred_region
      %815 = dma.done [#allocation3], 2048
    $region29: #{downsample_v2_forward.3} parent=1 // pred_fallthru
      _
    %816 = vsyncpa [#allocation3], 1

</llo_original>
